<compile_context>
chip_gen: v5e
topology: v5e:2x2
jax: 0.10.0
libtpu: 0.0.40
codegen_flags: <defaults>
</compile_context>

<pallas_src>
import functools

import jax
import jax.numpy as jnp
from jax.experimental import pallas as pl
from jax.experimental.pallas import tpu as pltpu


_N_LOSS_LANES = 8
# packed loss lanes (sublane 0 of the (8,128) output tile):
#   0: loss_ce (head)      1: class_error (head)   2: cardinality_error
#   3: bbox L1 sum         4: (1 - giou) sum       5: loss_inout (watchout)
#   6: class_error (inout) 7: heatmap sq-err sum
# lanes 3,4,7 are raw sums; they are divided by num_boxes in the jitted wrapper.


# ------------------------------ fused kernel ------------------------------- #

def _fused_loss_kernel(head_ref, watch_ref, thead_ref, twatch_ref, mmask_ref,
                       w_ref, tlen_ref, sbox_ref, tbox_ref, shm_ref, thm_ref,
                       out_ref):
    f32 = jnp.float32
    head = head_ref[0].astype(f32)        # (B, Q, C)
    watch = watch_ref[0].astype(f32)      # (B, Q, C)
    t_head = thead_ref[0]                 # (B, Q) int32
    t_watch = twatch_ref[0]               # (B, Q) int32
    mmask = mmask_ref[0].astype(f32)      # (B, Q)  1.0 at matched query slots
    w = w_ref[...].astype(f32)            # (1, C)  class weights
    B, Q, C = head.shape

    lane = jax.lax.broadcasted_iota(jnp.int32, (B, Q, C), 2)
    lane_f = lane.astype(f32)
    n_match = jnp.maximum(jnp.sum(mmask), 1.0)

    # --- weighted cross-entropy (== F.cross_entropy(logits.T, tgt, weight)) ---
    def weighted_ce_and_err(x, tgt):
        onehot = (lane == tgt[:, :, None]).astype(f32)                      # (B,Q,C)
        m = jnp.max(x, axis=-1, keepdims=True)
        lse = jnp.log(jnp.sum(jnp.exp(x - m), axis=-1, keepdims=True)) + m  # (B,Q,1)
        logp_y = jnp.sum(onehot * x, axis=-1, keepdims=True) - lse          # (B,Q,1)
        w_y = jnp.sum(onehot * w, axis=-1, keepdims=True)                   # (B,Q,1)
        ce = jnp.sum(w_y * (-logp_y)) / jnp.maximum(jnp.sum(w_y), 1e-12)
        # torch.argmax/topk semantics: first index attaining the max.
        first_max = jnp.min(jnp.where(x >= m, lane_f, float(C)), axis=-1)   # (B,Q)
        correct = (first_max == tgt.astype(f32)).astype(f32) * mmask
        class_err = 100.0 - 100.0 * jnp.sum(correct) / n_match
        return ce, class_err

    loss_ce, err_head = weighted_ce_and_err(head, t_head)
    loss_inout, err_watch = weighted_ce_and_err(watch, t_watch)

    # --- cardinality: argmax(-1) != C-1  <=>  max over foreground >= no-object ---
    is_noobj = lane == (C - 1)
    noobj = jnp.sum(jnp.where(is_noobj, head, 0.0), axis=-1)                # (B,Q)
    max_fg = jnp.max(jnp.where(is_noobj, -jnp.inf, head), axis=-1)          # (B,Q)
    nonempty = (max_fg >= noobj).astype(f32)
    card_pred = jnp.sum(nonempty, axis=1, keepdims=True)                    # (B,1)
    tl = tlen_ref[...].astype(f32)                                          # (B,1)
    card_err = jnp.sum(jnp.abs(card_pred - tl)) / B

    # --- matched boxes: rows are (cx, cy, w, h), lane-dense over M ---
    s = sbox_ref[0].astype(f32)            # (4, M)   per-layer matched predictions
    t = tbox_ref[...].astype(f32)          # (4, M)   layer-invariant targets
    l1_sum = jnp.sum(jnp.abs(s - t))

    def xyxy(b):
        return (b[0] - 0.5 * b[2], b[1] - 0.5 * b[3],
                b[0] + 0.5 * b[2], b[1] + 0.5 * b[3])

    sx1, sy1, sx2, sy2 = xyxy(s)
    tx1, ty1, tx2, ty2 = xyxy(t)
    iw = jnp.maximum(jnp.minimum(sx2, tx2) - jnp.maximum(sx1, tx1), 0.0)
    ih = jnp.maximum(jnp.minimum(sy2, ty2) - jnp.maximum(sy1, ty1), 0.0)
    inter = iw * ih
    area_s = (sx2 - sx1) * (sy2 - sy1)
    area_t = (tx2 - tx1) * (ty2 - ty1)
    union = area_s + area_t - inter
    area_c = ((jnp.maximum(sx2, tx2) - jnp.minimum(sx1, tx1)) *
              (jnp.maximum(sy2, ty2) - jnp.minimum(sy1, ty1)))
    union_safe = jnp.where(union > 0.0, union, 1.0)       # degenerate-box guard
    area_c_safe = jnp.where(area_c > 0.0, area_c, 1.0)
    giou = inter / union_safe - (area_c - union) / area_c_safe
    giou_sum = jnp.sum(1.0 - giou)

    # --- matched heatmaps (zero-padded to lane multiples; pad diff is 0) ---
    dh = shm_ref[0].astype(f32) - thm_ref[...].astype(f32)
    hm_sum = jnp.sum(dh * dh)

    # --- pack all losses into one lane-dense (8, 128) tile, sublane 0 ---
    vals = (loss_ce, err_head, card_err, l1_sum, giou_sum,
            loss_inout, err_watch, hm_sum)
    lane2 = jax.lax.broadcasted_iota(jnp.int32, (8, 128), 1)
    sub2 = jax.lax.broadcasted_iota(jnp.int32, (8, 128), 0)
    packed = jnp.zeros((8, 128), f32)
    for i, v in enumerate(vals):
        packed = jnp.where((sub2 == 0) & (lane2 == i), v, packed)
    out_ref[0] = packed


# ------------------------------ jitted core -------------------------------- #

def _criterion_core(head, watch, pboxes, phmaps, labels, inouts, tboxes, theat,
                    empty_w, tgt_len, num_boxes, matcher):
    """head/watch: [L,B,Q,C]; pboxes: [L,B,Q,4]; phmaps: [L,B,Q,HW];
    labels/inouts: [B,NT]; tboxes: [B,NT,4]; theat: [B,NT,HW]."""
    L, B, Q, C = head.shape
    NT = labels.shape[1]
    HW = phmaps.shape[-1]
    M = B * NT

    # matching, vectorized over layers and batch (each layer re-matched, as in ref)
    match_fn = jax.vmap(jax.vmap(matcher, in_axes=(0, 0, 0, 0)),
                        in_axes=(0, 0, None, None))
    src = match_fn(head, pboxes, labels, tboxes)            # [L, B, NT] int32

    l_idx = jnp.arange(L)[:, None, None]
    b_idx = jnp.arange(B)[None, :, None]

    # NOTE: PyTorch fills with `num_classes`, out of range for an empty_weight of
    # size num_classes; we use the last (no-object) channel index C-1.
    no_obj = C - 1
    lab_b = jnp.broadcast_to(labels[None].astype(jnp.int32), (L, B, NT))
    ino_b = jnp.broadcast_to(inouts[None].astype(jnp.int32), (L, B, NT))
    t_head = jnp.full((L, B, Q), no_obj, jnp.int32).at[l_idx, b_idx, src].set(lab_b)
    t_watch = jnp.full((L, B, Q), no_obj, jnp.int32).at[l_idx, b_idx, src].set(ino_b)
    mmask = jnp.zeros((L, B, Q), jnp.float32).at[l_idx, b_idx, src].set(1.0)

    # matched boxes, lane-dense (4, M) rows; targets are layer-invariant (no L copy)
    s_box = pboxes[l_idx, b_idx, src].reshape(L, M, 4).transpose(0, 2, 1)   # [L,4,M]
    t_box = tboxes.reshape(M, 4).T                                           # [4,M]

    # matched heatmaps, flattened and zero-padded to a multiple of 128 lanes
    total = M * HW
    P = -(-total // 128)
    pad = P * 128 - total
    s_hm = phmaps[l_idx, b_idx, src].reshape(L, total)
    t_hm = theat.reshape(total)
    if pad:
        s_hm = jnp.pad(s_hm, ((0, 0), (0, pad)))
        t_hm = jnp.pad(t_hm, ((0, pad),))
    s_hm = s_hm.reshape(L, P, 128)
    t_hm = t_hm.reshape(P, 128)

    out = pl.pallas_call(
        _fused_loss_kernel,
        out_shape=jax.ShapeDtypeStruct((L, 8, 128), jnp.float32),
        grid_spec=pltpu.PrefetchScalarGridSpec(
            num_scalar_prefetch=0,
            grid=(L,),
            in_specs=[
                pl.BlockSpec((1, B, Q, C), lambda l: (l, 0, 0, 0)),   # head logits
                pl.BlockSpec((1, B, Q, C), lambda l: (l, 0, 0, 0)),   # watchout logits
                pl.BlockSpec((1, B, Q), lambda l: (l, 0, 0)),         # head targets
                pl.BlockSpec((1, B, Q), lambda l: (l, 0, 0)),         # watchout targets
                pl.BlockSpec((1, B, Q), lambda l: (l, 0, 0)),         # matched mask
                pl.BlockSpec((1, C), lambda l: (0, 0)),               # class weights
                pl.BlockSpec((B, 1), lambda l: (0, 0)),               # target lengths
                pl.BlockSpec((1, 4, M), lambda l: (l, 0, 0)),         # src boxes
                pl.BlockSpec((4, M), lambda l: (0, 0)),               # tgt boxes (invariant)
                pl.BlockSpec((1, P, 128), lambda l: (l, 0, 0)),       # src heatmaps
                pl.BlockSpec((P, 128), lambda l: (0, 0)),             # tgt heatmaps (invariant)
            ],
            out_specs=pl.BlockSpec((1, 8, 128), lambda l: (l, 0, 0)),
        ),
        compiler_params=pltpu.CompilerParams(
            dimension_semantics=("parallel",)),   # layers shard over v7x's 2 TCs
    )(head, watch, t_head, t_watch, mmask, empty_w, tgt_len,
      s_box, t_box, s_hm, t_hm)

    per_layer = out[:, 0, :_N_LOSS_LANES]                   # [L, 8]
    inv_nb = 1.0 / jnp.maximum(num_boxes, 1.0)
    scale = jnp.ones((_N_LOSS_LANES,), jnp.float32).at[
        jnp.array([3, 4, 7])].set(inv_nb)                   # normalize box/heatmap sums
    return per_layer * scale[None, :]


# -------------------------------- matcher ----------------------------------- #

def greedy_matcher(pred_logits, pred_boxes, tgt_labels, tgt_boxes):
    """Per-image deterministic greedy assignment; vmapped over batch and layers.

    TODO(synk): Hungarian assignment (scipy.optimize.linear_sum_assignment) has no
    Pallas/TPU equivalent; a deterministic greedy per-target argmin is used.
    """
    Q = pred_logits.shape[0]
    NT = tgt_labels.shape[0]
    prob = jax.nn.softmax(pred_logits.astype(jnp.float32), axis=-1)
    cost_class = -prob[:, tgt_labels]                                         # [Q,NT]
    cost_bbox = jnp.sum(jnp.abs(pred_boxes[:, None, :] - tgt_boxes[None, :, :]), -1)
    cost = cost_class + 5.0 * cost_bbox

    def body(j, carry):
        used, src = carry
        col = jnp.where(used, jnp.inf, cost[:, j])
        i = jnp.argmin(col).astype(jnp.int32)
        return used.at[i].set(True), src.at[j].set(i)

    _, src = jax.lax.fori_loop(
        0, NT, body, (jnp.zeros((Q,), jnp.bool_), jnp.zeros((NT,), jnp.int32)))
    return src                                                                # [NT]


# ------------------------------ SetCriterion -------------------------------- #

class SetCriterion:
    def __init__(self, num_classes, matcher, weight_dict, eos_coef, losses):
        self.num_classes = num_classes
        self.matcher = matcher
        self.weight_dict = weight_dict
        self.eos_coef = eos_coef
        self.losses = losses
        self.empty_weight = jnp.ones((num_classes,), jnp.float32).at[-1].set(eos_coef)
        self._core = jax.jit(functools.partial(_criterion_core, matcher=matcher))

    def __call__(self, outputs, targets):
        layer_outs = [{k: outputs[k] for k in
                       ('pred_head', 'pred_watchout', 'pred_boxes', 'pred_heatmap')}]
        if 'aux_outputs' in outputs:
            layer_outs += list(outputs['aux_outputs'])

        head = jnp.stack([o['pred_head'] for o in layer_outs])       # [L,B,Q,C]
        watch = jnp.stack([o['pred_watchout'] for o in layer_outs])  # [L,B,Q,C]
        pboxes = jnp.stack([o['pred_boxes'] for o in layer_outs])    # [L,B,Q,4]
        phmaps = jnp.stack([o['pred_heatmap'] for o in layer_outs])  # [L,B,Q,HW]

        # TODO(synk): ragged per-image target counts would need padding + a
        # validity mask; this fused path assumes a uniform number of targets/image.
        labels = jnp.stack([t['labels'] for t in targets]).astype(jnp.int32)
        inouts = jnp.stack([t['inouts'] for t in targets]).astype(jnp.int32)
        tboxes = jnp.stack([t['bboxs'] for t in targets])
        theat = jnp.stack([t['heat_maps'] for t in targets])

        B = head.shape[1]
        tgt_len = jnp.asarray([t['labels'].shape[0] for t in targets],
                              jnp.float32).reshape(B, 1)
        # TODO(synk): distributed all_reduce / world-size division of num_boxes omitted.
        num_boxes = jnp.float32(
            max(sum(int(t['labels'].shape[0]) for t in targets), 1))

        per_layer = self._core(head, watch, pboxes, phmaps, labels, inouts,
                               tboxes, theat,
                               self.empty_weight.reshape(1, -1), tgt_len, num_boxes)

        losses = {}
        for li in range(per_layer.shape[0]):
            v = per_layer[li]
            suffix = '' if li == 0 else f'_{li - 1}'
            log_labels = (li == 0)       # aux layers: loss_labels called with log=False
            for loss in self.losses:
                if loss == 'labels':
                    losses['loss_ce' + suffix] = v[0]
                    if log_labels:
                        losses['class_error' + suffix] = v[1]
                elif loss == 'cardinality':
                    losses['cardinality_error' + suffix] = v[2]
                elif loss == 'boxes':
                    losses['loss_bbox' + suffix] = v[3]
                    losses['loss_giou' + suffix] = v[4]
                elif loss == 'inout':
                    losses['loss_inout' + suffix] = v[5]
                    losses['class_error' + suffix] = v[6]   # overwrites, as in reference
                elif loss == 'heatmap':
                    losses['loss_heatmap' + suffix] = v[7]
                elif loss == 'masks':
                    # TODO(synk): masks loss (ragged nested tensors + bilinear
                    # interpolate + sigmoid focal / dice) has no static-shape Pallas path.
                    continue
                else:
                    raise AssertionError(f'do you really want to compute {loss} loss?')
        return losses


# ---------------------------------- main ------------------------------------ #

if __name__ == "__main__":
    B, Q, C, NT, HW = 2, 8, 16, 3, 64   # batch, queries, classes(+no-object), targets/img, flat heatmap
    key = jax.random.PRNGKey(0)
    k = jax.random.split(key, 10)

    outputs = {
        'pred_head': jax.random.normal(k[0], (B, Q, C), jnp.float32),
        'pred_watchout': jax.random.normal(k[1], (B, Q, C), jnp.float32),
        'pred_boxes': jax.nn.sigmoid(jax.random.normal(k[2], (B, Q, 4), jnp.float32)),
        'pred_heatmap': jax.nn.sigmoid(jax.random.normal(k[3], (B, Q, HW), jnp.float32)),
        'aux_outputs': [{
            'pred_head': jax.random.normal(k[4], (B, Q, C), jnp.float32),
            'pred_watchout': jax.random.normal(k[5], (B, Q, C), jnp.float32),
            'pred_boxes': jax.nn.sigmoid(jax.random.normal(k[6], (B, Q, 4), jnp.float32)),
            'pred_heatmap': jax.nn.sigmoid(jax.random.normal(k[7], (B, Q, HW), jnp.float32)),
        }],
    }

    targets = []
    for b in range(B):
        kb = jax.random.fold_in(k[8], b)
        kk = jax.random.split(kb, 4)
        targets.append({
            'labels': jax.random.randint(kk[0], (NT,), 0, C - 1),
            'inouts': jax.random.randint(kk[1], (NT,), 0, C - 1),
            'bboxs': jax.nn.sigmoid(jax.random.normal(kk[2], (NT, 4), jnp.float32)) * 0.5 + 0.25,
            'heat_maps': jax.nn.sigmoid(jax.random.normal(kk[3], (NT, HW), jnp.float32)),
        })

    criterion = SetCriterion(
        num_classes=C,
        matcher=greedy_matcher,
        weight_dict={'loss_ce': 1.0, 'loss_bbox': 5.0, 'loss_giou': 2.0,
                     'loss_inout': 1.0, 'loss_heatmap': 1.0},
        eos_coef=0.1,
        losses=['labels', 'cardinality', 'boxes', 'inout', 'heatmap'],
    )

    losses = criterion(outputs, targets)
    losses = jax.tree_util.tree_map(jax.block_until_ready, losses)
    print("KERNEL_OK")
</pallas_src>

<mosaic_0001>
module attributes {stable_mosaic.version = 11 : i64} {
  func.func @_fused_loss_kernel(%arg0: i32, %arg1: memref<1x2x8x16xf32, #tpu.memory_space<vmem>>, %arg2: memref<1x2x8x16xf32, #tpu.memory_space<vmem>>, %arg3: memref<1x2x8xi32, #tpu.memory_space<vmem>>, %arg4: memref<1x2x8xi32, #tpu.memory_space<vmem>>, %arg5: memref<1x2x8xf32, #tpu.memory_space<vmem>>, %arg6: memref<1x16xf32, #tpu.memory_space<vmem>>, %arg7: memref<2x1xf32, #tpu.memory_space<vmem>>, %arg8: memref<1x4x6xf32, #tpu.memory_space<vmem>>, %arg9: memref<4x6xf32, #tpu.memory_space<vmem>>, %arg10: memref<1x3x128xf32, #tpu.memory_space<vmem>>, %arg11: memref<3x128xf32, #tpu.memory_space<vmem>>, %arg12: memref<1x8x128xf32, #tpu.memory_space<vmem>>) attributes {dimension_semantics = [#tpu.dimension_semantics<parallel>], iteration_bounds = array<i64: 2>, scalar_prefetch = 0 : i64, scratch_operands = 0 : i64, tpu.core_type = #tpu.core_type<tc>, window_params = [{transform_indices = @transform_0, window_bounds = array<i64: 1, 2, 8, 16>}, {transform_indices = @transform_1, window_bounds = array<i64: 1, 2, 8, 16>}, {transform_indices = @transform_2, window_bounds = array<i64: 1, 2, 8>}, {transform_indices = @transform_3, window_bounds = array<i64: 1, 2, 8>}, {transform_indices = @transform_4, window_bounds = array<i64: 1, 2, 8>}, {pipeline_mode = #tpu.pipeline_mode<synchronous>, transform_indices = @transform_5, window_bounds = array<i64: 1, 16>}, {pipeline_mode = #tpu.pipeline_mode<synchronous>, transform_indices = @transform_6, window_bounds = array<i64: 2, 1>}, {transform_indices = @transform_7, window_bounds = array<i64: 1, 4, 6>}, {pipeline_mode = #tpu.pipeline_mode<synchronous>, transform_indices = @transform_8, window_bounds = array<i64: 4, 6>}, {transform_indices = @transform_9, window_bounds = array<i64: 1, 3, 128>}, {pipeline_mode = #tpu.pipeline_mode<synchronous>, transform_indices = @transform_10, window_bounds = array<i64: 3, 128>}, {transform_indices = @transform_11, window_bounds = array<i64: 1, 8, 128>}]} {
    %c0 = arith.constant 0 : index
    %c0_0 = arith.constant 0 : index
    %c0_1 = arith.constant 0 : index
    %c0_2 = arith.constant 0 : index
    %0 = vector.load %arg1[%c0, %c0_0, %c0_1, %c0_2] : memref<1x2x8x16xf32, #tpu.memory_space<vmem>>, vector<1x2x8x16xf32>
    %1 = vector.shape_cast %0 : vector<1x2x8x16xf32> to vector<2x8x16xf32>
    %c0_3 = arith.constant 0 : index
    %c0_4 = arith.constant 0 : index
    %c0_5 = arith.constant 0 : index
    %c0_6 = arith.constant 0 : index
    %2 = vector.load %arg2[%c0_3, %c0_4, %c0_5, %c0_6] : memref<1x2x8x16xf32, #tpu.memory_space<vmem>>, vector<1x2x8x16xf32>
    %3 = vector.shape_cast %2 : vector<1x2x8x16xf32> to vector<2x8x16xf32>
    %c0_7 = arith.constant 0 : index
    %c0_8 = arith.constant 0 : index
    %c0_9 = arith.constant 0 : index
    %4 = vector.load %arg3[%c0_7, %c0_8, %c0_9] : memref<1x2x8xi32, #tpu.memory_space<vmem>>, vector<1x2x8xi32>
    %5 = vector.shape_cast %4 : vector<1x2x8xi32> to vector<2x8xi32>
    %c0_10 = arith.constant 0 : index
    %c0_11 = arith.constant 0 : index
    %c0_12 = arith.constant 0 : index
    %6 = vector.load %arg4[%c0_10, %c0_11, %c0_12] : memref<1x2x8xi32, #tpu.memory_space<vmem>>, vector<1x2x8xi32>
    %7 = vector.shape_cast %6 : vector<1x2x8xi32> to vector<2x8xi32>
    %c0_13 = arith.constant 0 : index
    %c0_14 = arith.constant 0 : index
    %c0_15 = arith.constant 0 : index
    %8 = vector.load %arg5[%c0_13, %c0_14, %c0_15] : memref<1x2x8xf32, #tpu.memory_space<vmem>>, vector<1x2x8xf32>
    %9 = vector.shape_cast %8 : vector<1x2x8xf32> to vector<2x8xf32>
    %c0_16 = arith.constant 0 : index
    %c0_17 = arith.constant 0 : index
    %10 = vector.load %arg6[%c0_16, %c0_17] : memref<1x16xf32, #tpu.memory_space<vmem>>, vector<1x16xf32>
    %11 = tpu.iota {dimensions = array<i32: 2>} : vector<2x8x16xi32>
    %12 = arith.sitofp %11 : vector<2x8x16xi32> to vector<2x8x16xf32>
    %13 = vector.shape_cast %9 : vector<2x8xf32> to vector<1x2x8xf32>
    %cst = arith.constant dense<0.000000e+00> : vector<1xf32>
    %14 = vector.multi_reduction <add>, %13, %cst [1, 2] : vector<1x2x8xf32> to vector<1xf32>
    %15 = vector.shape_cast %14 : vector<1xf32> to vector<1x1x1xf32>
    %16 = vector.extract %15[0, 0, 0] : f32 from vector<1x1x1xf32>
    %cst_18 = arith.constant 1.000000e+00 : f32
    %17 = arith.maximumf %16, %cst_18 : f32
    %18 = vector.shape_cast %5 : vector<2x8xi32> to vector<2x8x1xi32>
    %19 = vector.broadcast %18 : vector<2x8x1xi32> to vector<2x8x16xi32>
    %20 = arith.cmpi eq, %11, %19 : vector<2x8x16xi32>
    %21 = arith.extui %20 : vector<2x8x16xi1> to vector<2x8x16xi32>
    %22 = arith.sitofp %21 : vector<2x8x16xi32> to vector<2x8x16xf32>
    %cst_19 = arith.constant dense<0xFF800000> : vector<2x8xf32>
    %23 = vector.multi_reduction <maximumf>, %1, %cst_19 [2] : vector<2x8x16xf32> to vector<2x8xf32>
    %24 = vector.shape_cast %23 : vector<2x8xf32> to vector<2x8x1xf32>
    %25 = vector.broadcast %24 : vector<2x8x1xf32> to vector<2x8x16xf32>
    %26 = arith.subf %1, %25 : vector<2x8x16xf32>
    %27 = math.exp %26 : vector<2x8x16xf32>
    %cst_20 = arith.constant dense<0.000000e+00> : vector<2x8xf32>
    %28 = vector.multi_reduction <add>, %27, %cst_20 [2] : vector<2x8x16xf32> to vector<2x8xf32>
    %29 = vector.shape_cast %28 : vector<2x8xf32> to vector<2x8x1xf32>
    %30 = math.log %29 : vector<2x8x1xf32>
    %31 = arith.addf %30, %24 : vector<2x8x1xf32>
    %32 = arith.mulf %22, %1 : vector<2x8x16xf32>
    %cst_21 = arith.constant dense<0.000000e+00> : vector<2x8xf32>
    %33 = vector.multi_reduction <add>, %32, %cst_21 [2] : vector<2x8x16xf32> to vector<2x8xf32>
    %34 = vector.shape_cast %33 : vector<2x8xf32> to vector<2x8x1xf32>
    %35 = arith.subf %34, %31 : vector<2x8x1xf32>
    %36 = vector.shape_cast %10 : vector<1x16xf32> to vector<1x1x16xf32>
    %37 = vector.broadcast %36 : vector<1x1x16xf32> to vector<2x8x16xf32>
    %38 = arith.mulf %22, %37 : vector<2x8x16xf32>
    %cst_22 = arith.constant dense<0.000000e+00> : vector<2x8xf32>
    %39 = vector.multi_reduction <add>, %38, %cst_22 [2] : vector<2x8x16xf32> to vector<2x8xf32>
    %40 = vector.shape_cast %39 : vector<2x8xf32> to vector<2x8x1xf32>
    %cst_23 = arith.constant 0.000000e+00 : f32
    %41 = vector.broadcast %cst_23 : f32 to vector<2x8x1xf32>
    %42 = arith.subf %41, %35 : vector<2x8x1xf32>
    %43 = arith.mulf %40, %42 : vector<2x8x1xf32>
    %44 = vector.shape_cast %43 : vector<2x8x1xf32> to vector<1x2x8x1xf32>
    %cst_24 = arith.constant dense<0.000000e+00> : vector<1xf32>
    %45 = vector.multi_reduction <add>, %44, %cst_24 [1, 2, 3] : vector<1x2x8x1xf32> to vector<1xf32>
    %46 = vector.shape_cast %45 : vector<1xf32> to vector<1x1x1x1xf32>
    %47 = vector.extract %46[0, 0, 0, 0] : f32 from vector<1x1x1x1xf32>
    %48 = vector.shape_cast %40 : vector<2x8x1xf32> to vector<1x2x8x1xf32>
    %cst_25 = arith.constant dense<0.000000e+00> : vector<1xf32>
    %49 = vector.multi_reduction <add>, %48, %cst_25 [1, 2, 3] : vector<1x2x8x1xf32> to vector<1xf32>
    %50 = vector.shape_cast %49 : vector<1xf32> to vector<1x1x1x1xf32>
    %51 = vector.extract %50[0, 0, 0, 0] : f32 from vector<1x1x1x1xf32>
    %cst_26 = arith.constant 9.99999996E-13 : f32
    %52 = arith.maximumf %51, %cst_26 : f32
    %53 = arith.divf %47, %52 : f32
    %54 = vector.broadcast %24 : vector<2x8x1xf32> to vector<2x8x16xf32>
    %55 = arith.cmpf oge, %1, %54 : vector<2x8x16xf32>
    %cst_27 = arith.constant 1.600000e+01 : f32
    %56 = vector.broadcast %cst_27 : f32 to vector<2x8x16xf32>
    %57 = arith.select %55, %12, %56 : vector<2x8x16xi1>, vector<2x8x16xf32>
    %cst_28 = arith.constant dense<0x7F800000> : vector<2x8xf32>
    %58 = vector.multi_reduction <minimumf>, %57, %cst_28 [2] : vector<2x8x16xf32> to vector<2x8xf32>
    %59 = arith.sitofp %5 : vector<2x8xi32> to vector<2x8xf32>
    %60 = arith.cmpf oeq, %58, %59 : vector<2x8xf32>
    %61 = arith.extui %60 : vector<2x8xi1> to vector<2x8xi32>
    %62 = arith.sitofp %61 : vector<2x8xi32> to vector<2x8xf32>
    %63 = arith.mulf %62, %9 : vector<2x8xf32>
    %64 = vector.shape_cast %63 : vector<2x8xf32> to vector<1x2x8xf32>
    %cst_29 = arith.constant dense<0.000000e+00> : vector<1xf32>
    %65 = vector.multi_reduction <add>, %64, %cst_29 [1, 2] : vector<1x2x8xf32> to vector<1xf32>
    %66 = vector.shape_cast %65 : vector<1xf32> to vector<1x1x1xf32>
    %67 = vector.extract %66[0, 0, 0] : f32 from vector<1x1x1xf32>
    %cst_30 = arith.constant 1.000000e+02 : f32
    %68 = arith.mulf %cst_30, %67 : f32
    %69 = arith.divf %68, %17 : f32
    %cst_31 = arith.constant 1.000000e+02 : f32
    %70 = arith.subf %cst_31, %69 : f32
    %71 = vector.shape_cast %7 : vector<2x8xi32> to vector<2x8x1xi32>
    %72 = vector.broadcast %71 : vector<2x8x1xi32> to vector<2x8x16xi32>
    %73 = arith.cmpi eq, %11, %72 : vector<2x8x16xi32>
    %74 = arith.extui %73 : vector<2x8x16xi1> to vector<2x8x16xi32>
    %75 = arith.sitofp %74 : vector<2x8x16xi32> to vector<2x8x16xf32>
    %cst_32 = arith.constant dense<0xFF800000> : vector<2x8xf32>
    %76 = vector.multi_reduction <maximumf>, %3, %cst_32 [2] : vector<2x8x16xf32> to vector<2x8xf32>
    %77 = vector.shape_cast %76 : vector<2x8xf32> to vector<2x8x1xf32>
    %78 = vector.broadcast %77 : vector<2x8x1xf32> to vector<2x8x16xf32>
    %79 = arith.subf %3, %78 : vector<2x8x16xf32>
    %80 = math.exp %79 : vector<2x8x16xf32>
    %cst_33 = arith.constant dense<0.000000e+00> : vector<2x8xf32>
    %81 = vector.multi_reduction <add>, %80, %cst_33 [2] : vector<2x8x16xf32> to vector<2x8xf32>
    %82 = vector.shape_cast %81 : vector<2x8xf32> to vector<2x8x1xf32>
    %83 = math.log %82 : vector<2x8x1xf32>
    %84 = arith.addf %83, %77 : vector<2x8x1xf32>
    %85 = arith.mulf %75, %3 : vector<2x8x16xf32>
    %cst_34 = arith.constant dense<0.000000e+00> : vector<2x8xf32>
    %86 = vector.multi_reduction <add>, %85, %cst_34 [2] : vector<2x8x16xf32> to vector<2x8xf32>
    %87 = vector.shape_cast %86 : vector<2x8xf32> to vector<2x8x1xf32>
    %88 = arith.subf %87, %84 : vector<2x8x1xf32>
    %89 = vector.shape_cast %10 : vector<1x16xf32> to vector<1x1x16xf32>
    %90 = vector.broadcast %89 : vector<1x1x16xf32> to vector<2x8x16xf32>
    %91 = arith.mulf %75, %90 : vector<2x8x16xf32>
    %cst_35 = arith.constant dense<0.000000e+00> : vector<2x8xf32>
    %92 = vector.multi_reduction <add>, %91, %cst_35 [2] : vector<2x8x16xf32> to vector<2x8xf32>
    %93 = vector.shape_cast %92 : vector<2x8xf32> to vector<2x8x1xf32>
    %cst_36 = arith.constant 0.000000e+00 : f32
    %94 = vector.broadcast %cst_36 : f32 to vector<2x8x1xf32>
    %95 = arith.subf %94, %88 : vector<2x8x1xf32>
    %96 = arith.mulf %93, %95 : vector<2x8x1xf32>
    %97 = vector.shape_cast %96 : vector<2x8x1xf32> to vector<1x2x8x1xf32>
    %cst_37 = arith.constant dense<0.000000e+00> : vector<1xf32>
    %98 = vector.multi_reduction <add>, %97, %cst_37 [1, 2, 3] : vector<1x2x8x1xf32> to vector<1xf32>
    %99 = vector.shape_cast %98 : vector<1xf32> to vector<1x1x1x1xf32>
    %100 = vector.extract %99[0, 0, 0, 0] : f32 from vector<1x1x1x1xf32>
    %101 = vector.shape_cast %93 : vector<2x8x1xf32> to vector<1x2x8x1xf32>
    %cst_38 = arith.constant dense<0.000000e+00> : vector<1xf32>
    %102 = vector.multi_reduction <add>, %101, %cst_38 [1, 2, 3] : vector<1x2x8x1xf32> to vector<1xf32>
    %103 = vector.shape_cast %102 : vector<1xf32> to vector<1x1x1x1xf32>
    %104 = vector.extract %103[0, 0, 0, 0] : f32 from vector<1x1x1x1xf32>
    %cst_39 = arith.constant 9.99999996E-13 : f32
    %105 = arith.maximumf %104, %cst_39 : f32
    %106 = arith.divf %100, %105 : f32
    %107 = vector.broadcast %77 : vector<2x8x1xf32> to vector<2x8x16xf32>
    %108 = arith.cmpf oge, %3, %107 : vector<2x8x16xf32>
    %cst_40 = arith.constant 1.600000e+01 : f32
    %109 = vector.broadcast %cst_40 : f32 to vector<2x8x16xf32>
    %110 = arith.select %108, %12, %109 : vector<2x8x16xi1>, vector<2x8x16xf32>
    %cst_41 = arith.constant dense<0x7F800000> : vector<2x8xf32>
    %111 = vector.multi_reduction <minimumf>, %110, %cst_41 [2] : vector<2x8x16xf32> to vector<2x8xf32>
    %112 = arith.sitofp %7 : vector<2x8xi32> to vector<2x8xf32>
    %113 = arith.cmpf oeq, %111, %112 : vector<2x8xf32>
    %114 = arith.extui %113 : vector<2x8xi1> to vector<2x8xi32>
    %115 = arith.sitofp %114 : vector<2x8xi32> to vector<2x8xf32>
    %116 = arith.mulf %115, %9 : vector<2x8xf32>
    %117 = vector.shape_cast %116 : vector<2x8xf32> to vector<1x2x8xf32>
    %cst_42 = arith.constant dense<0.000000e+00> : vector<1xf32>
    %118 = vector.multi_reduction <add>, %117, %cst_42 [1, 2] : vector<1x2x8xf32> to vector<1xf32>
    %119 = vector.shape_cast %118 : vector<1xf32> to vector<1x1x1xf32>
    %120 = vector.extract %119[0, 0, 0] : f32 from vector<1x1x1xf32>
    %cst_43 = arith.constant 1.000000e+02 : f32
    %121 = arith.mulf %cst_43, %120 : f32
    %122 = arith.divf %121, %17 : f32
    %cst_44 = arith.constant 1.000000e+02 : f32
    %123 = arith.subf %cst_44, %122 : f32
    %c15_i32 = arith.constant 15 : i32
    %124 = vector.broadcast %c15_i32 : i32 to vector<2x8x16xi32>
    %125 = arith.cmpi eq, %11, %124 : vector<2x8x16xi32>
    %cst_45 = arith.constant 0.000000e+00 : f32
    %126 = vector.broadcast %cst_45 : f32 to vector<2x8x16xf32>
    %127 = arith.select %125, %1, %126 : vector<2x8x16xi1>, vector<2x8x16xf32>
    %cst_46 = arith.constant dense<0.000000e+00> : vector<2x8xf32>
    %128 = vector.multi_reduction <add>, %127, %cst_46 [2] : vector<2x8x16xf32> to vector<2x8xf32>
    %cst_47 = arith.constant 0xFF800000 : f32
    %129 = vector.broadcast %cst_47 : f32 to vector<2x8x16xf32>
    %130 = arith.select %125, %129, %1 : vector<2x8x16xi1>, vector<2x8x16xf32>
    %cst_48 = arith.constant dense<0xFF800000> : vector<2x8xf32>
    %131 = vector.multi_reduction <maximumf>, %130, %cst_48 [2] : vector<2x8x16xf32> to vector<2x8xf32>
    %132 = arith.cmpf oge, %131, %128 : vector<2x8xf32>
    %133 = arith.extui %132 : vector<2x8xi1> to vector<2x8xi32>
    %134 = arith.sitofp %133 : vector<2x8xi32> to vector<2x8xf32>
    %cst_49 = arith.constant dense<0.000000e+00> : vector<2xf32>
    %135 = vector.multi_reduction <add>, %134, %cst_49 [1] : vector<2x8xf32> to vector<2xf32>
    %136 = vector.shape_cast %135 : vector<2xf32> to vector<2x1xf32>
    %c0_50 = arith.constant 0 : index
    %c0_51 = arith.constant 0 : index
    %137 = vector.load %arg7[%c0_50, %c0_51] : memref<2x1xf32, #tpu.memory_space<vmem>>, vector<2x1xf32>
    %138 = arith.subf %136, %137 : vector<2x1xf32>
    %139 = math.absf %138 : vector<2x1xf32>
    %140 = vector.shape_cast %139 : vector<2x1xf32> to vector<1x2x1xf32>
    %cst_52 = arith.constant dense<0.000000e+00> : vector<1xf32>
    %141 = vector.multi_reduction <add>, %140, %cst_52 [1, 2] : vector<1x2x1xf32> to vector<1xf32>
    %142 = vector.shape_cast %141 : vector<1xf32> to vector<1x1x1xf32>
    %143 = vector.extract %142[0, 0, 0] : f32 from vector<1x1x1xf32>
    %cst_53 = arith.constant 2.000000e+00 : f32
    %144 = arith.divf %143, %cst_53 : f32
    %c0_54 = arith.constant 0 : index
    %c0_55 = arith.constant 0 : index
    %c0_56 = arith.constant 0 : index
    %145 = vector.load %arg8[%c0_54, %c0_55, %c0_56] : memref<1x4x6xf32, #tpu.memory_space<vmem>>, vector<1x4x6xf32>
    %146 = vector.shape_cast %145 : vector<1x4x6xf32> to vector<4x6xf32>
    %c0_57 = arith.constant 0 : index
    %c0_58 = arith.constant 0 : index
    %147 = vector.load %arg9[%c0_57, %c0_58] : memref<4x6xf32, #tpu.memory_space<vmem>>, vector<4x6xf32>
    %148 = arith.subf %146, %147 : vector<4x6xf32>
    %149 = math.absf %148 : vector<4x6xf32>
    %150 = vector.shape_cast %149 : vector<4x6xf32> to vector<1x4x6xf32>
    %cst_59 = arith.constant dense<0.000000e+00> : vector<1xf32>
    %151 = vector.multi_reduction <add>, %150, %cst_59 [1, 2] : vector<1x4x6xf32> to vector<1xf32>
    %152 = vector.shape_cast %151 : vector<1xf32> to vector<1x1x1xf32>
    %153 = vector.extract %152[0, 0, 0] : f32 from vector<1x1x1xf32>
    %154 = vector.extract_strided_slice %146 {offsets = [0, 0], sizes = [1, 6], strides = [1, 1]} : vector<4x6xf32> to vector<1x6xf32>
    %155 = vector.shape_cast %154 : vector<1x6xf32> to vector<6xf32>
    %156 = vector.extract_strided_slice %146 {offsets = [2, 0], sizes = [1, 6], strides = [1, 1]} : vector<4x6xf32> to vector<1x6xf32>
    %157 = vector.shape_cast %156 : vector<1x6xf32> to vector<6xf32>
    %cst_60 = arith.constant 5.000000e-01 : f32
    %158 = vector.broadcast %cst_60 : f32 to vector<6xf32>
    %159 = arith.mulf %158, %157 : vector<6xf32>
    %160 = arith.subf %155, %159 : vector<6xf32>
    %161 = vector.extract_strided_slice %146 {offsets = [1, 0], sizes = [1, 6], strides = [1, 1]} : vector<4x6xf32> to vector<1x6xf32>
    %162 = vector.shape_cast %161 : vector<1x6xf32> to vector<6xf32>
    %163 = vector.extract_strided_slice %146 {offsets = [3, 0], sizes = [1, 6], strides = [1, 1]} : vector<4x6xf32> to vector<1x6xf32>
    %164 = vector.shape_cast %163 : vector<1x6xf32> to vector<6xf32>
    %cst_61 = arith.constant 5.000000e-01 : f32
    %165 = vector.broadcast %cst_61 : f32 to vector<6xf32>
    %166 = arith.mulf %165, %164 : vector<6xf32>
    %167 = arith.subf %162, %166 : vector<6xf32>
    %168 = vector.extract_strided_slice %146 {offsets = [0, 0], sizes = [1, 6], strides = [1, 1]} : vector<4x6xf32> to vector<1x6xf32>
    %169 = vector.shape_cast %168 : vector<1x6xf32> to vector<6xf32>
    %170 = vector.extract_strided_slice %146 {offsets = [2, 0], sizes = [1, 6], strides = [1, 1]} : vector<4x6xf32> to vector<1x6xf32>
    %171 = vector.shape_cast %170 : vector<1x6xf32> to vector<6xf32>
    %cst_62 = arith.constant 5.000000e-01 : f32
    %172 = vector.broadcast %cst_62 : f32 to vector<6xf32>
    %173 = arith.mulf %172, %171 : vector<6xf32>
    %174 = arith.addf %169, %173 : vector<6xf32>
    %175 = vector.extract_strided_slice %146 {offsets = [1, 0], sizes = [1, 6], strides = [1, 1]} : vector<4x6xf32> to vector<1x6xf32>
    %176 = vector.shape_cast %175 : vector<1x6xf32> to vector<6xf32>
    %177 = vector.extract_strided_slice %146 {offsets = [3, 0], sizes = [1, 6], strides = [1, 1]} : vector<4x6xf32> to vector<1x6xf32>
    %178 = vector.shape_cast %177 : vector<1x6xf32> to vector<6xf32>
    %cst_63 = arith.constant 5.000000e-01 : f32
    %179 = vector.broadcast %cst_63 : f32 to vector<6xf32>
    %180 = arith.mulf %179, %178 : vector<6xf32>
    %181 = arith.addf %176, %180 : vector<6xf32>
    %182 = vector.extract_strided_slice %147 {offsets = [0, 0], sizes = [1, 6], strides = [1, 1]} : vector<4x6xf32> to vector<1x6xf32>
    %183 = vector.shape_cast %182 : vector<1x6xf32> to vector<6xf32>
    %184 = vector.extract_strided_slice %147 {offsets = [2, 0], sizes = [1, 6], strides = [1, 1]} : vector<4x6xf32> to vector<1x6xf32>
    %185 = vector.shape_cast %184 : vector<1x6xf32> to vector<6xf32>
    %cst_64 = arith.constant 5.000000e-01 : f32
    %186 = vector.broadcast %cst_64 : f32 to vector<6xf32>
    %187 = arith.mulf %186, %185 : vector<6xf32>
    %188 = arith.subf %183, %187 : vector<6xf32>
    %189 = vector.extract_strided_slice %147 {offsets = [1, 0], sizes = [1, 6], strides = [1, 1]} : vector<4x6xf32> to vector<1x6xf32>
    %190 = vector.shape_cast %189 : vector<1x6xf32> to vector<6xf32>
    %191 = vector.extract_strided_slice %147 {offsets = [3, 0], sizes = [1, 6], strides = [1, 1]} : vector<4x6xf32> to vector<1x6xf32>
    %192 = vector.shape_cast %191 : vector<1x6xf32> to vector<6xf32>
    %cst_65 = arith.constant 5.000000e-01 : f32
    %193 = vector.broadcast %cst_65 : f32 to vector<6xf32>
    %194 = arith.mulf %193, %192 : vector<6xf32>
    %195 = arith.subf %190, %194 : vector<6xf32>
    %196 = vector.extract_strided_slice %147 {offsets = [0, 0], sizes = [1, 6], strides = [1, 1]} : vector<4x6xf32> to vector<1x6xf32>
    %197 = vector.shape_cast %196 : vector<1x6xf32> to vector<6xf32>
    %198 = vector.extract_strided_slice %147 {offsets = [2, 0], sizes = [1, 6], strides = [1, 1]} : vector<4x6xf32> to vector<1x6xf32>
    %199 = vector.shape_cast %198 : vector<1x6xf32> to vector<6xf32>
    %cst_66 = arith.constant 5.000000e-01 : f32
    %200 = vector.broadcast %cst_66 : f32 to vector<6xf32>
    %201 = arith.mulf %200, %199 : vector<6xf32>
    %202 = arith.addf %197, %201 : vector<6xf32>
    %203 = vector.extract_strided_slice %147 {offsets = [1, 0], sizes = [1, 6], strides = [1, 1]} : vector<4x6xf32> to vector<1x6xf32>
    %204 = vector.shape_cast %203 : vector<1x6xf32> to vector<6xf32>
    %205 = vector.extract_strided_slice %147 {offsets = [3, 0], sizes = [1, 6], strides = [1, 1]} : vector<4x6xf32> to vector<1x6xf32>
    %206 = vector.shape_cast %205 : vector<1x6xf32> to vector<6xf32>
    %cst_67 = arith.constant 5.000000e-01 : f32
    %207 = vector.broadcast %cst_67 : f32 to vector<6xf32>
    %208 = arith.mulf %207, %206 : vector<6xf32>
    %209 = arith.addf %204, %208 : vector<6xf32>
    %210 = arith.minimumf %174, %202 : vector<6xf32>
    %211 = arith.maximumf %160, %188 : vector<6xf32>
    %212 = arith.subf %210, %211 : vector<6xf32>
    %cst_68 = arith.constant 0.000000e+00 : f32
    %213 = vector.broadcast %cst_68 : f32 to vector<6xf32>
    %214 = arith.maximumf %212, %213 : vector<6xf32>
    %215 = arith.minimumf %181, %209 : vector<6xf32>
    %216 = arith.maximumf %167, %195 : vector<6xf32>
    %217 = arith.subf %215, %216 : vector<6xf32>
    %cst_69 = arith.constant 0.000000e+00 : f32
    %218 = vector.broadcast %cst_69 : f32 to vector<6xf32>
    %219 = arith.maximumf %217, %218 : vector<6xf32>
    %220 = arith.mulf %214, %219 : vector<6xf32>
    %221 = arith.subf %174, %160 : vector<6xf32>
    %222 = arith.subf %181, %167 : vector<6xf32>
    %223 = arith.mulf %221, %222 : vector<6xf32>
    %224 = arith.subf %202, %188 : vector<6xf32>
    %225 = arith.subf %209, %195 : vector<6xf32>
    %226 = arith.mulf %224, %225 : vector<6xf32>
    %227 = arith.addf %223, %226 : vector<6xf32>
    %228 = arith.subf %227, %220 : vector<6xf32>
    %229 = arith.maximumf %174, %202 : vector<6xf32>
    %230 = arith.minimumf %160, %188 : vector<6xf32>
    %231 = arith.subf %229, %230 : vector<6xf32>
    %232 = arith.maximumf %181, %209 : vector<6xf32>
    %233 = arith.minimumf %167, %195 : vector<6xf32>
    %234 = arith.subf %232, %233 : vector<6xf32>
    %235 = arith.mulf %231, %234 : vector<6xf32>
    %cst_70 = arith.constant 0.000000e+00 : f32
    %236 = vector.broadcast %cst_70 : f32 to vector<6xf32>
    %237 = arith.cmpf ogt, %228, %236 : vector<6xf32>
    %cst_71 = arith.constant 1.000000e+00 : f32
    %238 = vector.broadcast %cst_71 : f32 to vector<6xf32>
    %239 = arith.select %237, %228, %238 : vector<6xi1>, vector<6xf32>
    %cst_72 = arith.constant 0.000000e+00 : f32
    %240 = vector.broadcast %cst_72 : f32 to vector<6xf32>
    %241 = arith.cmpf ogt, %235, %240 : vector<6xf32>
    %cst_73 = arith.constant 1.000000e+00 : f32
    %242 = vector.broadcast %cst_73 : f32 to vector<6xf32>
    %243 = arith.select %241, %235, %242 : vector<6xi1>, vector<6xf32>
    %244 = arith.divf %220, %239 : vector<6xf32>
    %245 = arith.subf %235, %228 : vector<6xf32>
    %246 = arith.divf %245, %243 : vector<6xf32>
    %247 = arith.subf %244, %246 : vector<6xf32>
    %cst_74 = arith.constant 1.000000e+00 : f32
    %248 = vector.broadcast %cst_74 : f32 to vector<6xf32>
    %249 = arith.subf %248, %247 : vector<6xf32>
    %250 = vector.shape_cast %249 : vector<6xf32> to vector<1x6xf32>
    %cst_75 = arith.constant dense<0.000000e+00> : vector<1xf32>
    %251 = vector.multi_reduction <add>, %250, %cst_75 [1] : vector<1x6xf32> to vector<1xf32>
    %252 = vector.shape_cast %251 : vector<1xf32> to vector<1x1xf32>
    %253 = vector.extract %252[0, 0] : f32 from vector<1x1xf32>
    %c0_76 = arith.constant 0 : index
    %c0_77 = arith.constant 0 : index
    %c0_78 = arith.constant 0 : index
    %254 = vector.load %arg10[%c0_76, %c0_77, %c0_78] : memref<1x3x128xf32, #tpu.memory_space<vmem>>, vector<1x3x128xf32>
    %255 = vector.shape_cast %254 : vector<1x3x128xf32> to vector<3x128xf32>
    %c0_79 = arith.constant 0 : index
    %c0_80 = arith.constant 0 : index
    %256 = vector.load %arg11[%c0_79, %c0_80] : memref<3x128xf32, #tpu.memory_space<vmem>>, vector<3x128xf32>
    %257 = arith.subf %255, %256 : vector<3x128xf32>
    %258 = arith.mulf %257, %257 : vector<3x128xf32>
    %259 = vector.shape_cast %258 : vector<3x128xf32> to vector<1x3x128xf32>
    %cst_81 = arith.constant dense<0.000000e+00> : vector<1xf32>
    %260 = vector.multi_reduction <add>, %259, %cst_81 [1, 2] : vector<1x3x128xf32> to vector<1xf32>
    %261 = vector.shape_cast %260 : vector<1xf32> to vector<1x1x1xf32>
    %262 = vector.extract %261[0, 0, 0] : f32 from vector<1x1x1xf32>
    %263 = tpu.iota {dimensions = array<i32: 1>} : vector<8x128xi32>
    %264 = tpu.iota {dimensions = array<i32: 0>} : vector<8x128xi32>
    %cst_82 = arith.constant 0.000000e+00 : f32
    %265 = vector.broadcast %cst_82 : f32 to vector<8x128xf32>
    %c0_i32 = arith.constant 0 : i32
    %266 = vector.broadcast %c0_i32 : i32 to vector<8x128xi32>
    %267 = arith.cmpi eq, %264, %266 : vector<8x128xi32>
    %c0_i32_83 = arith.constant 0 : i32
    %268 = vector.broadcast %c0_i32_83 : i32 to vector<8x128xi32>
    %269 = arith.cmpi eq, %263, %268 : vector<8x128xi32>
    %270 = arith.andi %267, %269 : vector<8x128xi1>
    %271 = vector.broadcast %53 : f32 to vector<8x128xf32>
    %272 = arith.select %270, %271, %265 : vector<8x128xi1>, vector<8x128xf32>
    %c0_i32_84 = arith.constant 0 : i32
    %273 = vector.broadcast %c0_i32_84 : i32 to vector<8x128xi32>
    %274 = arith.cmpi eq, %264, %273 : vector<8x128xi32>
    %c1_i32 = arith.constant 1 : i32
    %275 = vector.broadcast %c1_i32 : i32 to vector<8x128xi32>
    %276 = arith.cmpi eq, %263, %275 : vector<8x128xi32>
    %277 = arith.andi %274, %276 : vector<8x128xi1>
    %278 = vector.broadcast %70 : f32 to vector<8x128xf32>
    %279 = arith.select %277, %278, %272 : vector<8x128xi1>, vector<8x128xf32>
    %c0_i32_85 = arith.constant 0 : i32
    %280 = vector.broadcast %c0_i32_85 : i32 to vector<8x128xi32>
    %281 = arith.cmpi eq, %264, %280 : vector<8x128xi32>
    %c2_i32 = arith.constant 2 : i32
    %282 = vector.broadcast %c2_i32 : i32 to vector<8x128xi32>
    %283 = arith.cmpi eq, %263, %282 : vector<8x128xi32>
    %284 = arith.andi %281, %283 : vector<8x128xi1>
    %285 = vector.broadcast %144 : f32 to vector<8x128xf32>
    %286 = arith.select %284, %285, %279 : vector<8x128xi1>, vector<8x128xf32>
    %c0_i32_86 = arith.constant 0 : i32
    %287 = vector.broadcast %c0_i32_86 : i32 to vector<8x128xi32>
    %288 = arith.cmpi eq, %264, %287 : vector<8x128xi32>
    %c3_i32 = arith.constant 3 : i32
    %289 = vector.broadcast %c3_i32 : i32 to vector<8x128xi32>
    %290 = arith.cmpi eq, %263, %289 : vector<8x128xi32>
    %291 = arith.andi %288, %290 : vector<8x128xi1>
    %292 = vector.broadcast %153 : f32 to vector<8x128xf32>
    %293 = arith.select %291, %292, %286 : vector<8x128xi1>, vector<8x128xf32>
    %c0_i32_87 = arith.constant 0 : i32
    %294 = vector.broadcast %c0_i32_87 : i32 to vector<8x128xi32>
    %295 = arith.cmpi eq, %264, %294 : vector<8x128xi32>
    %c4_i32 = arith.constant 4 : i32
    %296 = vector.broadcast %c4_i32 : i32 to vector<8x128xi32>
    %297 = arith.cmpi eq, %263, %296 : vector<8x128xi32>
    %298 = arith.andi %295, %297 : vector<8x128xi1>
    %299 = vector.broadcast %253 : f32 to vector<8x128xf32>
    %300 = arith.select %298, %299, %293 : vector<8x128xi1>, vector<8x128xf32>
    %c0_i32_88 = arith.constant 0 : i32
    %301 = vector.broadcast %c0_i32_88 : i32 to vector<8x128xi32>
    %302 = arith.cmpi eq, %264, %301 : vector<8x128xi32>
    %c5_i32 = arith.constant 5 : i32
    %303 = vector.broadcast %c5_i32 : i32 to vector<8x128xi32>
    %304 = arith.cmpi eq, %263, %303 : vector<8x128xi32>
    %305 = arith.andi %302, %304 : vector<8x128xi1>
    %306 = vector.broadcast %106 : f32 to vector<8x128xf32>
    %307 = arith.select %305, %306, %300 : vector<8x128xi1>, vector<8x128xf32>
    %c0_i32_89 = arith.constant 0 : i32
    %308 = vector.broadcast %c0_i32_89 : i32 to vector<8x128xi32>
    %309 = arith.cmpi eq, %264, %308 : vector<8x128xi32>
    %c6_i32 = arith.constant 6 : i32
    %310 = vector.broadcast %c6_i32 : i32 to vector<8x128xi32>
    %311 = arith.cmpi eq, %263, %310 : vector<8x128xi32>
    %312 = arith.andi %309, %311 : vector<8x128xi1>
    %313 = vector.broadcast %123 : f32 to vector<8x128xf32>
    %314 = arith.select %312, %313, %307 : vector<8x128xi1>, vector<8x128xf32>
    %c0_i32_90 = arith.constant 0 : i32
    %315 = vector.broadcast %c0_i32_90 : i32 to vector<8x128xi32>
    %316 = arith.cmpi eq, %264, %315 : vector<8x128xi32>
    %c7_i32 = arith.constant 7 : i32
    %317 = vector.broadcast %c7_i32 : i32 to vector<8x128xi32>
    %318 = arith.cmpi eq, %263, %317 : vector<8x128xi32>
    %319 = arith.andi %316, %318 : vector<8x128xi1>
    %320 = vector.broadcast %262 : f32 to vector<8x128xf32>
    %321 = arith.select %319, %320, %314 : vector<8x128xi1>, vector<8x128xf32>
    %c0_91 = arith.constant 0 : index
    %c0_92 = arith.constant 0 : index
    %c0_93 = arith.constant 0 : index
    %322 = vector.load %arg12[%c0_91, %c0_92, %c0_93] : memref<1x8x128xf32, #tpu.memory_space<vmem>>, vector<1x8x128xf32>
    %323 = vector.shape_cast %322 : vector<1x8x128xf32> to vector<8x128xf32>
    %324 = vector.shape_cast %321 : vector<8x128xf32> to vector<1x8x128xf32>
    tpu.vector_store %arg12[%c0_91, %c0_92, %c0_93], %324 {strides = array<i32>} : memref<1x8x128xf32, #tpu.memory_space<vmem>>, vector<1x8x128xf32>,
    return
  }
  func.func @transform_0(%arg0: i32) -> (i32, i32, i32, i32) {
    %c0_i32 = arith.constant 0 : i32
    %c0_i32_0 = arith.constant 0 : i32
    %c0_i32_1 = arith.constant 0 : i32
    %c0_i32_2 = arith.constant 0 : i32
    return %arg0, %c0_i32, %c0_i32_0, %c0_i32_1 : i32, i32, i32, i32
  }
  func.func @transform_1(%arg0: i32) -> (i32, i32, i32, i32) {
    %c0_i32 = arith.constant 0 : i32
    %c0_i32_0 = arith.constant 0 : i32
    %c0_i32_1 = arith.constant 0 : i32
    %c0_i32_2 = arith.constant 0 : i32
    return %arg0, %c0_i32, %c0_i32_0, %c0_i32_1 : i32, i32, i32, i32
  }
  func.func @transform_2(%arg0: i32) -> (i32, i32, i32) {
    %c0_i32 = arith.constant 0 : i32
    %c0_i32_0 = arith.constant 0 : i32
    %c0_i32_1 = arith.constant 0 : i32
    return %arg0, %c0_i32, %c0_i32_0 : i32, i32, i32
  }
  func.func @transform_3(%arg0: i32) -> (i32, i32, i32) {
    %c0_i32 = arith.constant 0 : i32
    %c0_i32_0 = arith.constant 0 : i32
    %c0_i32_1 = arith.constant 0 : i32
    return %arg0, %c0_i32, %c0_i32_0 : i32, i32, i32
  }
  func.func @transform_4(%arg0: i32) -> (i32, i32, i32) {
    %c0_i32 = arith.constant 0 : i32
    %c0_i32_0 = arith.constant 0 : i32
    %c0_i32_1 = arith.constant 0 : i32
    return %arg0, %c0_i32, %c0_i32_0 : i32, i32, i32
  }
  func.func @transform_5(%arg0: i32) -> (i32, i32) {
    %c0_i32 = arith.constant 0 : i32
    %c0_i32_0 = arith.constant 0 : i32
    %c0_i32_1 = arith.constant 0 : i32
    return %c0_i32, %c0_i32_0 : i32, i32
  }
  func.func @transform_6(%arg0: i32) -> (i32, i32) {
    %c0_i32 = arith.constant 0 : i32
    %c0_i32_0 = arith.constant 0 : i32
    %c0_i32_1 = arith.constant 0 : i32
    return %c0_i32, %c0_i32_0 : i32, i32
  }
  func.func @transform_7(%arg0: i32) -> (i32, i32, i32) {
    %c0_i32 = arith.constant 0 : i32
    %c0_i32_0 = arith.constant 0 : i32
    %c0_i32_1 = arith.constant 0 : i32
    return %arg0, %c0_i32, %c0_i32_0 : i32, i32, i32
  }
  func.func @transform_8(%arg0: i32) -> (i32, i32) {
    %c0_i32 = arith.constant 0 : i32
    %c0_i32_0 = arith.constant 0 : i32
    %c0_i32_1 = arith.constant 0 : i32
    return %c0_i32, %c0_i32_0 : i32, i32
  }
  func.func @transform_9(%arg0: i32) -> (i32, i32, i32) {
    %c0_i32 = arith.constant 0 : i32
    %c0_i32_0 = arith.constant 0 : i32
    %c0_i32_1 = arith.constant 0 : i32
    return %arg0, %c0_i32, %c0_i32_0 : i32, i32, i32
  }
  func.func @transform_10(%arg0: i32) -> (i32, i32) {
    %c0_i32 = arith.constant 0 : i32
    %c0_i32_0 = arith.constant 0 : i32
    %c0_i32_1 = arith.constant 0 : i32
    return %c0_i32, %c0_i32_0 : i32, i32
  }
  func.func @transform_11(%arg0: i32) -> (i32, i32, i32) {
    %c0_i32 = arith.constant 0 : i32
    %c0_i32_0 = arith.constant 0 : i32
    %c0_i32_1 = arith.constant 0 : i32
    return %arg0, %c0_i32, %c0_i32_0 : i32, i32, i32
  }
}

</mosaic_0001>

<llo_original>
// kernel: neg.2
$region0: #{neg.2}
  #allocation0 [shape = 's32[1]{0}', space=sflag, size = 0x4, scoped, tag = 'scoped memory for neg.2']
  %s0 = inlined_call_operand.vmem [shape: f32[6,2,8], index: 0, kind: input, shape index: {}]
  %s1 = inlined_call_operand.vmem [shape: f32[6,2,8], index: 1, kind: output, shape index: {}]
  %v2 = vld [vmem:[%s0] sm:$0x3]
  %3 = xla_tuple %v2
  %4 = xla_tuple %3
  %v5 = vxor.u32 %v2, 2147483648
  %6 = xla_tuple %v5
  %7 = vst [vmem:[%s1] sm:$0x3] %v5
  %s8 = scalar_lea.vmem %s0, 2
  %v9 = vld [vmem:[%s8] sm:$0x3]
  %10 = xla_tuple %v9
  %11 = xla_tuple %10
  %v12 = vxor.u32 %v9, 2147483648
  %13 = xla_tuple %v12
  %s14 = scalar_lea.vmem %s1, 2
  %15 = vst [vmem:[%s14] sm:$0x3] %v12
  %s16 = scalar_lea.vmem %s0, 4
  %v17 = vld [vmem:[%s16] sm:$0x3]
  %18 = xla_tuple %v17
  %19 = xla_tuple %18
  %v20 = vxor.u32 %v17, 2147483648
  %21 = xla_tuple %v20
  %s22 = scalar_lea.vmem %s1, 4
  %23 = vst [vmem:[%s22] sm:$0x3] %v20
  %s24 = scalar_lea.vmem %s0, 6
  %v25 = vld [vmem:[%s24] sm:$0x3]
  %26 = xla_tuple %v25
  %27 = xla_tuple %26
  %v28 = vxor.u32 %v25, 2147483648
  %29 = xla_tuple %v28
  %s30 = scalar_lea.vmem %s1, 6
  %31 = vst [vmem:[%s30] sm:$0x3] %v28
  %s32 = scalar_lea.vmem %s0, 8
  %v33 = vld [vmem:[%s32] sm:$0x3]
  %34 = xla_tuple %v33
  %35 = xla_tuple %34
  %v36 = vxor.u32 %v33, 2147483648
  %37 = xla_tuple %v36
  %s38 = scalar_lea.vmem %s1, 8
  %39 = vst [vmem:[%s38] sm:$0x3] %v36
  %s40 = scalar_lea.vmem %s0, 10
  %v41 = vld [vmem:[%s40] sm:$0x3]
  %42 = xla_tuple %v41
  %43 = xla_tuple %42
  %v44 = vxor.u32 %v41, 2147483648
  %45 = xla_tuple %v44
  %s46 = scalar_lea.vmem %s1, 10
  %47 = vst [vmem:[%s46] sm:$0x3] %v44

// kernel: _criterion_core.1
$region0: #{_criterion_core.1}
  #allocation0 [shape = 'u32[]', space=smem, size = 0x4, offset = 0x4, fixed_abs, tag = 'smem constant byte address 0x4 - core index']
  #allocation1 [shape = 'u32[72,128]{1,0:T(1,128)}', space=vmem, size = 0x9000, scoped, tag = 'internal scratch']
  %s0 = inlined_call_operand.vmem [shape: f32[2,2,8,16], index: 0, kind: input, shape index: {}]
  %s1 = inlined_call_operand.vmem [shape: f32[2,2,8,16], index: 1, kind: input, shape index: {}]
  %s2 = inlined_call_operand.vmem [shape: s32[2,2,8], index: 2, kind: input, shape index: {}]
  %s3 = inlined_call_operand.vmem [shape: s32[2,2,8], index: 3, kind: input, shape index: {}]
  %s4 = inlined_call_operand.vmem [shape: f32[2,2,8], index: 4, kind: input, shape index: {}]
  %s5 = inlined_call_operand.vmem [shape: f32[1,16], index: 5, kind: input, shape index: {}]
  %s6 = inlined_call_operand.vmem [shape: f32[2,1], index: 6, kind: input, shape index: {}]
  %s7 = inlined_call_operand.vmem [shape: f32[2,4,6], index: 7, kind: input, shape index: {}]
  %s8 = inlined_call_operand.vmem [shape: f32[4,6], index: 8, kind: input, shape index: {}]
  %s9 = inlined_call_operand.vmem [shape: f32[2,3,128], index: 9, kind: input, shape index: {}]
  %s10 = inlined_call_operand.vmem [shape: f32[3,128], index: 10, kind: input, shape index: {}]
  %s11 = inlined_call_operand.vmem [shape: f32[2,8,128], index: 11, kind: output, shape index: {}]
  %s12 = sld [smem:[#allocation0]]
  $region77: #{_criterion_core.1} parent=0
    _
  %s14 = ssub.s32 1, %s12
  %s15 = scalar_select 0, %s14, %s12
  loop: start=0, step=1, limit=4
  $region2: #{_criterion_core.1} parent=0 // loop_pre_header
    _
  $region3: #{_criterion_core.1} parent=0 // loop_header
    %s17 = sphi 0, %s21
    %p18 = scmp.ge.s32.totalorder %s17, 4
    %s27 = sphi 0, %s29
    %s30 = sphi 0, %s27
    %s31 = sphi 0, %s30
    %s47 = sphi 0, %s31
    %s53 = sphi 0, %s55
    %s56 = sphi 0, %s53
    %s57 = sphi 0, %s56
    %s73 = sphi 0, %s57
    %s79 = sphi 0, %s81
    %s82 = sphi 0, %s79
    %s83 = sphi 0, %s82
    %s99 = sphi 0, %s83
    %s105 = sphi 0, %s107
    %s108 = sphi 0, %s105
    %s109 = sphi 0, %s108
    %s125 = sphi 0, %s109
    %s131 = sphi 0, %s133
    %s134 = sphi 0, %s131
    %s135 = sphi 0, %s134
    %s151 = sphi 0, %s135
    %s155 = sphi 0, %s155
    %s157 = sphi 0, %s155
    %s158 = sphi 0, %s157
    %s172 = sphi 0, %s158
    %s176 = sphi 0, %s176
    %s178 = sphi 0, %s176
    %s179 = sphi 0, %s178
    %s193 = sphi 0, %s179
    %s199 = sphi 0, %s201
    %s202 = sphi 0, %s199
    %s203 = sphi 0, %s202
    %s219 = sphi 0, %s203
    %s223 = sphi 0, %s223
    %s225 = sphi 0, %s223
    %s226 = sphi 0, %s225
    %s240 = sphi 0, %s226
    %s246 = sphi 0, %s248
    %s249 = sphi 0, %s246
    %s250 = sphi 0, %s249
    %s266 = sphi 0, %s250
    %s270 = sphi 0, %s270
    %s272 = sphi 0, %s270
    %s273 = sphi 0, %s272
    %s287 = sphi 0, %s273
    %s293 = sphi 0, %s295
    %s296 = sphi 0, %s293
    %s297 = sphi 0, %s296
    %s313 = sphi 0, %s297
  $region4: #{_criterion_core.1} parent=0 // loop_header_branch
    %20 = sbr.rel (%p18) target = $region8
  $region5: #{_criterion_core.1} parent=0 // loop_body
    %s22 = ssub.s32 %s17, 1
    %s23 = ssub.s32 %s17, 2
    %s24 = sadd.s32 %s17, 1
    %s25 = ssub.s32 %s17, %s24
    %p26 = scmp.eq.s32.totalorder %s25, 0
    %s28 = sadd.s32 %s27, 1
    %s29 = scalar_select %p26, %s27, %s28
    %p32 = pneg %p26
    %p33 = scmp.eq.s32.totalorder %s17, 1
    %p34 = por %p32, %p33
    %p35 = scmp.ne.s32.totalorder %s27, %s30
    %p36 = scmp.eq.s32.totalorder %s17, 0
    %p37 = por %p35, %p36
    %p38 = scmp.ne.s32.totalorder %s27, %s30
    %p39 = scmp.eq.s32.totalorder %s22, 1
    %p40 = por %p38, %p39
    %p41 = scmp.ne.s32.totalorder %s30, %s31
    %p42 = scmp.eq.s32.totalorder %s22, 0
    %p43 = por %p41, %p42
    %p44 = scmp.ne.s32.totalorder %s30, %s31
    %p45 = scmp.eq.s32.totalorder %s23, 1
    %p46 = por %p44, %p45
    %p48 = scmp.ne.s32.totalorder %s31, %s47
    %p49 = scmp.eq.s32.totalorder %s23, 0
    %p50 = por %p48, %p49
    %s51 = ssub.s32 %s17, %s24
    %p52 = scmp.eq.s32.totalorder %s51, 0
    %s54 = sadd.s32 %s53, 1
    %s55 = scalar_select %p52, %s53, %s54
    %p58 = pneg %p52
    %p59 = scmp.eq.s32.totalorder %s17, 1
    %p60 = por %p58, %p59
    %p61 = scmp.ne.s32.totalorder %s53, %s56
    %p62 = scmp.eq.s32.totalorder %s17, 0
    %p63 = por %p61, %p62
    %p64 = scmp.ne.s32.totalorder %s53, %s56
    %p65 = scmp.eq.s32.totalorder %s22, 1
    %p66 = por %p64, %p65
    %p67 = scmp.ne.s32.totalorder %s56, %s57
    %p68 = scmp.eq.s32.totalorder %s22, 0
    %p69 = por %p67, %p68
    %p70 = scmp.ne.s32.totalorder %s56, %s57
    %p71 = scmp.eq.s32.totalorder %s23, 1
    %p72 = por %p70, %p71
    %p74 = scmp.ne.s32.totalorder %s57, %s73
    %p75 = scmp.eq.s32.totalorder %s23, 0
    %p76 = por %p74, %p75
    %s77 = ssub.s32 %s17, %s24
    %p78 = scmp.eq.s32.totalorder %s77, 0
    %s80 = sadd.s32 %s79, 1
    %s81 = scalar_select %p78, %s79, %s80
    %p84 = pneg %p78
    %p85 = scmp.eq.s32.totalorder %s17, 1
    %p86 = por %p84, %p85
    %p87 = scmp.ne.s32.totalorder %s79, %s82
    %p88 = scmp.eq.s32.totalorder %s17, 0
    %p89 = por %p87, %p88
    %p90 = scmp.ne.s32.totalorder %s79, %s82
    %p91 = scmp.eq.s32.totalorder %s22, 1
    %p92 = por %p90, %p91
    %p93 = scmp.ne.s32.totalorder %s82, %s83
    %p94 = scmp.eq.s32.totalorder %s22, 0
    %p95 = por %p93, %p94
    %p96 = scmp.ne.s32.totalorder %s82, %s83
    %p97 = scmp.eq.s32.totalorder %s23, 1
    %p98 = por %p96, %p97
    %p100 = scmp.ne.s32.totalorder %s83, %s99
    %p101 = scmp.eq.s32.totalorder %s23, 0
    %p102 = por %p100, %p101
    %s103 = ssub.s32 %s17, %s24
    %p104 = scmp.eq.s32.totalorder %s103, 0
    %s106 = sadd.s32 %s105, 1
    %s107 = scalar_select %p104, %s105, %s106
    %p110 = pneg %p104
    %p111 = scmp.eq.s32.totalorder %s17, 1
    %p112 = por %p110, %p111
    %p113 = scmp.ne.s32.totalorder %s105, %s108
    %p114 = scmp.eq.s32.totalorder %s17, 0
    %p115 = por %p113, %p114
    %p116 = scmp.ne.s32.totalorder %s105, %s108
    %p117 = scmp.eq.s32.totalorder %s22, 1
    %p118 = por %p116, %p117
    %p119 = scmp.ne.s32.totalorder %s108, %s109
    %p120 = scmp.eq.s32.totalorder %s22, 0
    %p121 = por %p119, %p120
    %p122 = scmp.ne.s32.totalorder %s108, %s109
    %p123 = scmp.eq.s32.totalorder %s23, 1
    %p124 = por %p122, %p123
    %p126 = scmp.ne.s32.totalorder %s109, %s125
    %p127 = scmp.eq.s32.totalorder %s23, 0
    %p128 = por %p126, %p127
    %s129 = ssub.s32 %s17, %s24
    %p130 = scmp.eq.s32.totalorder %s129, 0
    %s132 = sadd.s32 %s131, 1
    %s133 = scalar_select %p130, %s131, %s132
    %p136 = pneg %p130
    %p137 = scmp.eq.s32.totalorder %s17, 1
    %p138 = por %p136, %p137
    %p139 = scmp.ne.s32.totalorder %s131, %s134
    %p140 = scmp.eq.s32.totalorder %s17, 0
    %p141 = por %p139, %p140
    %p142 = scmp.ne.s32.totalorder %s131, %s134
    %p143 = scmp.eq.s32.totalorder %s22, 1
    %p144 = por %p142, %p143
    %p145 = scmp.ne.s32.totalorder %s134, %s135
    %p146 = scmp.eq.s32.totalorder %s22, 0
    %p147 = por %p145, %p146
    %p148 = scmp.ne.s32.totalorder %s134, %s135
    %p149 = scmp.eq.s32.totalorder %s23, 1
    %p150 = por %p148, %p149
    %p152 = scmp.ne.s32.totalorder %s135, %s151
    %p153 = scmp.eq.s32.totalorder %s23, 0
    %p154 = por %p152, %p153
    %s156 = sadd.s32 %s155, 1
    %p159 = scmp.eq.s32.totalorder %s17, 1
    %p160 = scmp.ne.s32.totalorder %s155, %s157
    %p161 = scmp.eq.s32.totalorder %s17, 0
    %p162 = por %p160, %p161
    %p163 = scmp.ne.s32.totalorder %s155, %s157
    %p164 = scmp.eq.s32.totalorder %s22, 1
    %p165 = por %p163, %p164
    %p166 = scmp.ne.s32.totalorder %s157, %s158
    %p167 = scmp.eq.s32.totalorder %s22, 0
    %p168 = por %p166, %p167
    %p169 = scmp.ne.s32.totalorder %s157, %s158
    %p170 = scmp.eq.s32.totalorder %s23, 1
    %p171 = por %p169, %p170
    %p173 = scmp.ne.s32.totalorder %s158, %s172
    %p174 = scmp.eq.s32.totalorder %s23, 0
    %p175 = por %p173, %p174
    %s177 = sadd.s32 %s176, 1
    %p180 = scmp.eq.s32.totalorder %s17, 1
    %p181 = scmp.ne.s32.totalorder %s176, %s178
    %p182 = scmp.eq.s32.totalorder %s17, 0
    %p183 = por %p181, %p182
    %p184 = scmp.ne.s32.totalorder %s176, %s178
    %p185 = scmp.eq.s32.totalorder %s22, 1
    %p186 = por %p184, %p185
    %p187 = scmp.ne.s32.totalorder %s178, %s179
    %p188 = scmp.eq.s32.totalorder %s22, 0
    %p189 = por %p187, %p188
    %p190 = scmp.ne.s32.totalorder %s178, %s179
    %p191 = scmp.eq.s32.totalorder %s23, 1
    %p192 = por %p190, %p191
    %p194 = scmp.ne.s32.totalorder %s179, %s193
    %p195 = scmp.eq.s32.totalorder %s23, 0
    %p196 = por %p194, %p195
    %s197 = ssub.s32 %s17, %s24
    %p198 = scmp.eq.s32.totalorder %s197, 0
    %s200 = sadd.s32 %s199, 1
    %s201 = scalar_select %p198, %s199, %s200
    %p204 = pneg %p198
    %p205 = scmp.eq.s32.totalorder %s17, 1
    %p206 = por %p204, %p205
    %p207 = scmp.ne.s32.totalorder %s199, %s202
    %p208 = scmp.eq.s32.totalorder %s17, 0
    %p209 = por %p207, %p208
    %p210 = scmp.ne.s32.totalorder %s199, %s202
    %p211 = scmp.eq.s32.totalorder %s22, 1
    %p212 = por %p210, %p211
    %p213 = scmp.ne.s32.totalorder %s202, %s203
    %p214 = scmp.eq.s32.totalorder %s22, 0
    %p215 = por %p213, %p214
    %p216 = scmp.ne.s32.totalorder %s202, %s203
    %p217 = scmp.eq.s32.totalorder %s23, 1
    %p218 = por %p216, %p217
    %p220 = scmp.ne.s32.totalorder %s203, %s219
    %p221 = scmp.eq.s32.totalorder %s23, 0
    %p222 = por %p220, %p221
    %s224 = sadd.s32 %s223, 1
    %p227 = scmp.eq.s32.totalorder %s17, 1
    %p228 = scmp.ne.s32.totalorder %s223, %s225
    %p229 = scmp.eq.s32.totalorder %s17, 0
    %p230 = por %p228, %p229
    %p231 = scmp.ne.s32.totalorder %s223, %s225
    %p232 = scmp.eq.s32.totalorder %s22, 1
    %p233 = por %p231, %p232
    %p234 = scmp.ne.s32.totalorder %s225, %s226
    %p235 = scmp.eq.s32.totalorder %s22, 0
    %p236 = por %p234, %p235
    %p237 = scmp.ne.s32.totalorder %s225, %s226
    %p238 = scmp.eq.s32.totalorder %s23, 1
    %p239 = por %p237, %p238
    %p241 = scmp.ne.s32.totalorder %s226, %s240
    %p242 = scmp.eq.s32.totalorder %s23, 0
    %p243 = por %p241, %p242
    %s244 = ssub.s32 %s17, %s24
    %p245 = scmp.eq.s32.totalorder %s244, 0
    %s247 = sadd.s32 %s246, 1
    %s248 = scalar_select %p245, %s246, %s247
    %p251 = pneg %p245
    %p252 = scmp.eq.s32.totalorder %s17, 1
    %p253 = por %p251, %p252
    %p254 = scmp.ne.s32.totalorder %s246, %s249
    %p255 = scmp.eq.s32.totalorder %s17, 0
    %p256 = por %p254, %p255
    %p257 = scmp.ne.s32.totalorder %s246, %s249
    %p258 = scmp.eq.s32.totalorder %s22, 1
    %p259 = por %p257, %p258
    %p260 = scmp.ne.s32.totalorder %s249, %s250
    %p261 = scmp.eq.s32.totalorder %s22, 0
    %p262 = por %p260, %p261
    %p263 = scmp.ne.s32.totalorder %s249, %s250
    %p264 = scmp.eq.s32.totalorder %s23, 1
    %p265 = por %p263, %p264
    %p267 = scmp.ne.s32.totalorder %s250, %s266
    %p268 = scmp.eq.s32.totalorder %s23, 0
    %p269 = por %p267, %p268
    %s271 = sadd.s32 %s270, 1
    %p274 = scmp.eq.s32.totalorder %s17, 1
    %p275 = scmp.ne.s32.totalorder %s270, %s272
    %p276 = scmp.eq.s32.totalorder %s17, 0
    %p277 = por %p275, %p276
    %p278 = scmp.ne.s32.totalorder %s270, %s272
    %p279 = scmp.eq.s32.totalorder %s22, 1
    %p280 = por %p278, %p279
    %p281 = scmp.ne.s32.totalorder %s272, %s273
    %p282 = scmp.eq.s32.totalorder %s22, 0
    %p283 = por %p281, %p282
    %p284 = scmp.ne.s32.totalorder %s272, %s273
    %p285 = scmp.eq.s32.totalorder %s23, 1
    %p286 = por %p284, %p285
    %p288 = scmp.ne.s32.totalorder %s273, %s287
    %p289 = scmp.eq.s32.totalorder %s23, 0
    %p290 = por %p288, %p289
    %s291 = ssub.s32 %s17, %s24
    %p292 = scmp.eq.s32.totalorder %s291, 0
    %s294 = sadd.s32 %s293, 1
    %s295 = scalar_select %p292, %s293, %s294
    %p298 = pneg %p292
    %p299 = scmp.eq.s32.totalorder %s17, 1
    %p300 = por %p298, %p299
    %p301 = scmp.ne.s32.totalorder %s293, %s296
    %p302 = scmp.eq.s32.totalorder %s17, 0
    %p303 = por %p301, %p302
    %p304 = scmp.ne.s32.totalorder %s293, %s296
    %p305 = scmp.eq.s32.totalorder %s22, 1
    %p306 = por %p304, %p305
    %p307 = scmp.ne.s32.totalorder %s296, %s297
    %p308 = scmp.eq.s32.totalorder %s22, 0
    %p309 = por %p307, %p308
    %p310 = scmp.ne.s32.totalorder %s296, %s297
    %p311 = scmp.eq.s32.totalorder %s23, 1
    %p312 = por %p310, %p311
    %p314 = scmp.ne.s32.totalorder %s297, %s313
    %p315 = scmp.eq.s32.totalorder %s23, 0
    %p316 = por %p314, %p315
    %p317 = scmp.le.s32.totalorder 1, %s17
    %p318 = scmp.lt.s32.totalorder %s17, 3
    %p319 = pnand %p317, %p318
    %p320 = pneg %p319
    // Predicated region
    $region9: #{_criterion_core.1} parent=5 // pred_check
      _
    $region10: #{_criterion_core.1} parent=5 // pred_check_branch
      %322 = sbr.rel (%p319) target = $region12
    $region11: #{_criterion_core.1} parent=5 // pred_region
      %s323 = ssub.s32 %s17, 1
      // Predicated region
      $region13: #{_criterion_core.1} parent=11 // pred_check
        %p324 = pneg %p168
      $region14: #{_criterion_core.1} parent=11 // pred_check_branch
        %326 = sbr.rel (%p324) target = $region16
      $region15: #{_criterion_core.1} parent=11 // pred_region
        _
      $region16: #{_criterion_core.1} parent=11 // pred_fallthru
        _
      // Predicated region
      $region17: #{_criterion_core.1} parent=11 // pred_check
        %p327 = pneg %p189
      $region18: #{_criterion_core.1} parent=11 // pred_check_branch
        %329 = sbr.rel (%p327) target = $region20
      $region19: #{_criterion_core.1} parent=11 // pred_region
        _
      $region20: #{_criterion_core.1} parent=11 // pred_fallthru
        _
      // Predicated region
      $region21: #{_criterion_core.1} parent=11 // pred_check
        %p330 = pneg %p236
      $region22: #{_criterion_core.1} parent=11 // pred_check_branch
        %332 = sbr.rel (%p330) target = $region24
      $region23: #{_criterion_core.1} parent=11 // pred_region
        _
      $region24: #{_criterion_core.1} parent=11 // pred_fallthru
        _
      // Predicated region
      $region25: #{_criterion_core.1} parent=11 // pred_check
        %p333 = pneg %p283
      $region26: #{_criterion_core.1} parent=11 // pred_check_branch
        %335 = sbr.rel (%p333) target = $region28
      $region27: #{_criterion_core.1} parent=11 // pred_region
        _
      $region28: #{_criterion_core.1} parent=11 // pred_fallthru
        _
    $region12: #{_criterion_core.1} parent=5 // pred_fallthru
      _
    %p336 = scmp.lt.s32.totalorder %s17, 2
    // Predicated region
    $region29: #{_criterion_core.1} parent=5 // pred_check
      %p337 = pneg %p336
    $region30: #{_criterion_core.1} parent=5 // pred_check_branch
      %339 = sbr.rel (%p337) target = $region32
    $region31: #{_criterion_core.1} parent=5 // pred_region
      // Predicated region
      $region33: #{_criterion_core.1} parent=31 // pred_check
        %p340 = pneg %p37
      $region34: #{_criterion_core.1} parent=31 // pred_check_branch
        %342 = sbr.rel (%p340) target = $region36
      $region35: #{_criterion_core.1} parent=31 // pred_region
        %p343 = scmp.lt.s32.totalorder %s17, 1
        %s344 = scalar_select %p343, %s17, 1
        %s345 = smul.addr %s344, 2
        %s346 = smul.addr %s345, 8
        %s347 = scalar_lea.vmem %s0, %s346
      $region36: #{_criterion_core.1} parent=31 // pred_fallthru
        _
      // Predicated region
      $region37: #{_criterion_core.1} parent=31 // pred_check
        %p348 = pneg %p63
      $region38: #{_criterion_core.1} parent=31 // pred_check_branch
        %350 = sbr.rel (%p348) target = $region40
      $region39: #{_criterion_core.1} parent=31 // pred_region
        %p351 = scmp.lt.s32.totalorder %s17, 1
        %s352 = scalar_select %p351, %s17, 1
        %s353 = smul.addr %s352, 2
        %s354 = smul.addr %s353, 8
        %s355 = scalar_lea.vmem %s1, %s354
      $region40: #{_criterion_core.1} parent=31 // pred_fallthru
        _
      // Predicated region
      $region41: #{_criterion_core.1} parent=31 // pred_check
        %p356 = pneg %p89
      $region42: #{_criterion_core.1} parent=31 // pred_check_branch
        %358 = sbr.rel (%p356) target = $region44
      $region43: #{_criterion_core.1} parent=31 // pred_region
        %p359 = scmp.lt.s32.totalorder %s17, 1
        %s360 = scalar_select %p359, %s17, 1
        %s361 = smul.addr %s360, 2
        %s362 = scalar_lea.vmem %s2, %s361
      $region44: #{_criterion_core.1} parent=31 // pred_fallthru
        _
      // Predicated region
      $region45: #{_criterion_core.1} parent=31 // pred_check
        %p363 = pneg %p115
      $region46: #{_criterion_core.1} parent=31 // pred_check_branch
        %365 = sbr.rel (%p363) target = $region48
      $region47: #{_criterion_core.1} parent=31 // pred_region
        %p366 = scmp.lt.s32.totalorder %s17, 1
        %s367 = scalar_select %p366, %s17, 1
        %s368 = smul.addr %s367, 2
        %s369 = scalar_lea.vmem %s3, %s368
      $region48: #{_criterion_core.1} parent=31 // pred_fallthru
        _
      // Predicated region
      $region49: #{_criterion_core.1} parent=31 // pred_check
        %p370 = pneg %p141
      $region50: #{_criterion_core.1} parent=31 // pred_check_branch
        %372 = sbr.rel (%p370) target = $region52
      $region51: #{_criterion_core.1} parent=31 // pred_region
        %p373 = scmp.lt.s32.totalorder %s17, 1
        %s374 = scalar_select %p373, %s17, 1
        %s375 = smul.addr %s374, 2
        %s376 = scalar_lea.vmem %s4, %s375
      $region52: #{_criterion_core.1} parent=31 // pred_fallthru
        _
      // Predicated region
      $region53: #{_criterion_core.1} parent=31 // pred_check
        %p377 = pneg %p209
      $region54: #{_criterion_core.1} parent=31 // pred_check_branch
        %379 = sbr.rel (%p377) target = $region56
      $region55: #{_criterion_core.1} parent=31 // pred_region
        %p380 = scmp.lt.s32.totalorder %s17, 1
        %s381 = scalar_select %p380, %s17, 1
        %s382 = smul.addr %s381, 4
        %s383 = scalar_lea.vmem %s7, %s382
      $region56: #{_criterion_core.1} parent=31 // pred_fallthru
        _
      // Predicated region
      $region57: #{_criterion_core.1} parent=31 // pred_check
        %p384 = pneg %p256
      $region58: #{_criterion_core.1} parent=31 // pred_check_branch
        %386 = sbr.rel (%p384) target = $region60
      $region59: #{_criterion_core.1} parent=31 // pred_region
        %p387 = scmp.lt.s32.totalorder %s17, 1
        %s388 = scalar_select %p387, %s17, 1
        %s389 = smul.addr %s388, 4
        %s390 = scalar_lea.vmem %s9, %s389
      $region60: #{_criterion_core.1} parent=31 // pred_fallthru
        _
    $region32: #{_criterion_core.1} parent=5 // pred_fallthru
      _
    %p391 = scmp.le.s32.totalorder 1, %s17
    %p392 = scmp.lt.s32.totalorder %s17, 3
    %p393 = pnand %p391, %p392
    %p394 = pneg %p393
    // Predicated region
    $region61: #{_criterion_core.1} parent=5 // pred_check
      _
    $region62: #{_criterion_core.1} parent=5 // pred_check_branch
      %396 = sbr.rel (%p393) target = $region64
    $region63: #{_criterion_core.1} parent=5 // pred_region
      %s397 = ssub.s32 %s17, 1
      %p398 = scmp.lt.s32.totalorder %s22, 1
      %s399 = scalar_select %p398, %s22, 1
      %s400 = smul.addr %s399, 2
      %s401 = smul.addr %s400, 8
      %s402 = scalar_lea.vmem %s0, %s401
      %p403 = pneg %p43
      %p404 = pneg %p40
      %p405 = scmp.lt.s32.totalorder %s22, 1
      %s406 = scalar_select %p405, %s22, 1
      %s407 = smul.addr %s406, 2
      %s408 = smul.addr %s407, 8
      %s409 = scalar_lea.vmem %s1, %s408
      %p410 = pneg %p69
      %p411 = pneg %p66
      %p412 = scmp.lt.s32.totalorder %s22, 1
      %s413 = scalar_select %p412, %s22, 1
      %s414 = smul.addr %s413, 2
      %s415 = scalar_lea.vmem %s2, %s414
      %p416 = pneg %p95
      %p417 = pneg %p92
      %p418 = scmp.lt.s32.totalorder %s22, 1
      %s419 = scalar_select %p418, %s22, 1
      %s420 = smul.addr %s419, 2
      %s421 = scalar_lea.vmem %s3, %s420
      %p422 = pneg %p121
      %p423 = pneg %p118
      %p424 = scmp.lt.s32.totalorder %s22, 1
      %s425 = scalar_select %p424, %s22, 1
      %s426 = smul.addr %s425, 2
      %s427 = scalar_lea.vmem %s4, %s426
      %p428 = pneg %p147
      %p429 = pneg %p144
      %p430 = pneg %p168
      %p431 = pneg %p165
      %p432 = pneg %p189
      %p433 = pneg %p186
      %p434 = scmp.lt.s32.totalorder %s22, 1
      %s435 = scalar_select %p434, %s22, 1
      %s436 = smul.addr %s435, 4
      %s437 = scalar_lea.vmem %s7, %s436
      %p438 = pneg %p215
      %p439 = pneg %p212
      %p440 = pneg %p236
      %p441 = pneg %p233
      %p442 = scmp.lt.s32.totalorder %s22, 1
      %s443 = scalar_select %p442, %s22, 1
      %s444 = smul.addr %s443, 4
      %s445 = scalar_lea.vmem %s9, %s444
      %p446 = pneg %p262
      %p447 = pneg %p259
      %p448 = pneg %p283
      %p449 = pneg %p280
      %p450 = pneg %p309
      %p451 = pneg %p306
      %p452 = scmp.lt.s32.totalorder %s22, 1
      %s453 = scalar_select %p452, %s22, 1
      %s454 = smul.addr %s453, 8
      %s455 = scalar_lea.vmem %s11, %s454
      %p456 = scmp.lt.s32.totalorder %s22, 1
      %s457 = scalar_select %p456, %s22, 1
      %s458 = smul.addr %s457, 2
      %s459 = smul.addr %s458, 8
      %s460 = scalar_lea.vmem %s0, %s459
      %p461 = scmp.lt.s32.totalorder %s22, 1
      %s462 = scalar_select %p461, %s22, 1
      %s463 = smul.addr %s462, 2
      %s464 = smul.addr %s463, 8
      %s465 = scalar_lea.vmem %s1, %s464
      %p466 = scmp.lt.s32.totalorder %s22, 1
      %s467 = scalar_select %p466, %s22, 1
      %s468 = smul.addr %s467, 2
      %s469 = scalar_lea.vmem %s2, %s468
      %p470 = scmp.lt.s32.totalorder %s22, 1
      %s471 = scalar_select %p470, %s22, 1
      %s472 = smul.addr %s471, 2
      %s473 = scalar_lea.vmem %s3, %s472
      %p474 = scmp.lt.s32.totalorder %s22, 1
      %s475 = scalar_select %p474, %s22, 1
      %s476 = smul.addr %s475, 2
      %s477 = scalar_lea.vmem %s4, %s476
      %p478 = scmp.lt.s32.totalorder %s22, 1
      %s479 = scalar_select %p478, %s22, 1
      %s480 = smul.addr %s479, 4
      %s481 = scalar_lea.vmem %s7, %s480
      %p482 = scmp.lt.s32.totalorder %s22, 1
      %s483 = scalar_select %p482, %s22, 1
      %s484 = smul.addr %s483, 4
      %s485 = scalar_lea.vmem %s9, %s484
      %p486 = scmp.lt.s32.totalorder %s22, 1
      %s487 = scalar_select %p486, %s22, 1
      %s488 = smul.addr %s487, 8
      %s489 = scalar_lea.vmem %s11, %s488
      %v490 = vld [vmem:[%s460] sm:$0xff]
      %v491 = vld [vmem:[%s460 + $0x8] sm:$0xff]
      %v492 = vld [vmem:[%s465] sm:$0xff]
      %v493 = vld [vmem:[%s465 + $0x8] sm:$0xff]
      %v494 = vld [vmem:[%s469] sm:$0x3]
      %v495 = vld [vmem:[%s473] sm:$0x3]
      %v496 = vld [vmem:[%s477] sm:$0x3]
      %v497 = vld [vmem:[%s5] sm:$0x1]
      %v498 = vlaneseq
      %v499 = vand.u32 %v498, 127
      %v500 = vcvt.s32.f32 %v499
      %vm501 = vcmask 58368
      %v502 = vsel %vm501, %v496, 0.0
      %503 = vadd.xlane.f32.xlu0 %v502
      %v504 = vpop.xlane.xlu0 %503
      %v505 = vrot.slane %v504, 4
      %v506 = vadd.f32 %v504, %v505
      %v507 = vrot.slane %v506, 2
      %v508 = vadd.f32 %v506, %v507
      %v509 = vrot.slane %v508, 1
      %v510 = vadd.f32 %v508, %v509
      %s511 = vtos %v510
      %s512 = smax.f32 %s511, 1.0
      %v513 = vperm.slane %v494, 0
      %v514 = vlaneseq
      %v515 = vshrl.u32 %v514, 7
      %517 = vset.pattern.permute.xlu0 %v515
      %518 = vperm.xlu0 %517, %v513
      %v519 = vpop.permute.xlu0 %518
      %v520 = vperm.slane %v494, 1
      %v521 = vlaneseq
      %v522 = vshrl.u32 %v521, 7
      %524 = vset.pattern.permute.xlu0 %v522
      %525 = vperm.xlu0 %524, %v520
      %v526 = vpop.permute.xlu0 %525
      %vm527 = vcmp.eq.s32.totalorder %v499, %v519
      %vm528 = vcmp.eq.s32.totalorder %v499, %v526
      %v529 = vsel %vm527, 1, 0
      %v530 = vsel %vm528, 1, 0
      %v531 = vcvt.s32.f32 %v529
      %v532 = vcvt.s32.f32 %v530
      %vm533 = vcmask 130048
      %v534 = vsel %vm533, %v490, -inf
      %535 = vmax.xlane.f32.xlu0 %v534
      %v536 = vpop.xlane.xlu0 %535
      %v537 = vsel %vm533, %v491, -inf
      %538 = vmax.xlane.f32.xlu0 %v537
      %v539 = vpop.xlane.xlu0 %538
      %v540 = vsub.f32 %v490, %v536
      %v541 = vsub.f32 %v491, %v539
      %v542 = vmul.f32 %v540, 1.442695
      %v543 = vpow.pop %v542
      %v544 = vmul.f32 %v541, 1.442695
      %v545 = vpow.pop %v544
      %v546 = vsel %vm533, %v543, 0.0
      %547 = vadd.xlane.f32.xlu0 %v546
      %v548 = vpop.xlane.xlu0 %547
      %v549 = vsel %vm533, %v545, 0.0
      %550 = vadd.xlane.f32.xlu0 %v549
      %v551 = vpop.xlane.xlu0 %550
      %v552 = vlog2.pop %v548
      %v553 = vmul.f32 %v552, 0.6931472
      %v554 = vlog2.pop %v551
      %v555 = vmul.f32 %v554, 0.6931472
      %v556 = vadd.f32 %v553, %v536
      %v557 = vadd.f32 %v555, %v539
      %v558 = vmul.f32 %v531, %v490
      %v559 = vmul.f32 %v532, %v491
      %v560 = vsel %vm533, %v558, 0.0
      %561 = vadd.xlane.f32.xlu0 %v560
      %v562 = vpop.xlane.xlu0 %561
      %v563 = vsel %vm533, %v559, 0.0
      %564 = vadd.xlane.f32.xlu0 %v563
      %v565 = vpop.xlane.xlu0 %564
      %v566 = vsub.f32 %v562, %v556
      %v567 = vsub.f32 %v565, %v557
      %v569 = vperm.slane %v497, 0
      %v571 = vmul.f32 %v531, %v569
      %v572 = vmul.f32 %v532, %v569
      %v573 = vsel %vm533, %v571, 0.0
      %574 = vadd.xlane.f32.xlu0 %v573
      %v575 = vpop.xlane.xlu0 %574
      %v576 = vsel %vm533, %v572, 0.0
      %577 = vadd.xlane.f32.xlu0 %v576
      %v578 = vpop.xlane.xlu0 %577
      %v579 = vsub.f32 0.0, %v566
      %v580 = vsub.f32 0.0, %v567
      %v581 = vmul.f32 %v575, %v579
      %v582 = vmul.f32 %v578, %v580
      %vm583 = vcmask 7168
      %v584 = vsel %vm583, %v581, 0.0
      %v585 = vsel %vm583, %v582, 0.0
      %v586 = vadd.f32 %v584, %v585
      %587 = vadd.xlane.f32.xlu0 %v586
      %v588 = vpop.xlane.xlu0 %587
      %v589 = vrot.slane %v588, 4
      %v590 = vadd.f32 %v588, %v589
      %v591 = vrot.slane %v590, 2
      %v592 = vadd.f32 %v590, %v591
      %v593 = vrot.slane %v592, 1
      %v594 = vadd.f32 %v592, %v593
      %s595 = vtos %v594
      %v596 = vsel %vm583, %v575, 0.0
      %v597 = vsel %vm583, %v578, 0.0
      %v598 = vadd.f32 %v596, %v597
      %599 = vadd.xlane.f32.xlu0 %v598
      %v600 = vpop.xlane.xlu0 %599
      %v601 = vrot.slane %v600, 4
      %v602 = vadd.f32 %v600, %v601
      %v603 = vrot.slane %v602, 2
      %v604 = vadd.f32 %v602, %v603
      %v605 = vrot.slane %v604, 1
      %v606 = vadd.f32 %v604, %v605
      %s607 = vtos %v606
      %s608 = smax.f32 %s607, 1e-12
      %v609 = vstv %s608
      %v610 = vrcp.pop %v609
      %v611 = vmul.f32 %v609, %v610
      %v612 = vsub.f32 1.0, %v611
      %v613 = vmul.f32 %v610, %v612
      %v614 = vadd.f32 %v610, %v613
      %vm615 = vweird.f32 %v609
      %vm616 = vweird.f32 %v610
      %vm617 = vmor %vm615, %vm616
      %v618 = vsel %vm617, %v610, %v614
      %v619 = vand.u32 2147483647, %v609
      %vm620 = vcmp.eq.f32.partialorder %v619, 8.507059e+37
      %v621 = vand.u32 %v609, 2147483648
      %v622 = vor.u32 1.1754944e-38, %v621
      %v623 = vsel %vm620, %v622, %v618
      %s624 = vtos %v623
      %s625 = smul.f32 %s595, %s624
      %vm626 = vcmp.ge.f32.partialorder %v490, %v536
      %vm627 = vcmp.ge.f32.partialorder %v491, %v539
      %v628 = vsel %vm626, %v500, 16.0
      %v629 = vsel %vm627, %v500, 16.0
      %v630 = vsel %vm533, %v628, inf
      %631 = vmin.xlane.f32.xlu0 %v630
      %v632 = vpop.xlane.xlu0 %631
      %v633 = vsel %vm533, %v629, inf
      %634 = vmin.xlane.f32.xlu0 %v633
      %v635 = vpop.xlane.xlu0 %634
      %v636 = vcvt.s32.f32 %v494
      %v638 = vperm.slane %v636, 0
      %v639 = vlaneseq
      %v640 = vshrl.u32 %v639, 7
      %642 = vset.pattern.permute.xlu0 %v640
      %643 = vperm.xlu0 %642, %v638
      %v644 = vpop.permute.xlu0 %643
      %v645 = vperm.slane %v636, 1
      %v646 = vlaneseq
      %v647 = vshrl.u32 %v646, 7
      %649 = vset.pattern.permute.xlu0 %v647
      %650 = vperm.xlu0 %649, %v645
      %v651 = vpop.permute.xlu0 %650
      %vm654 = vcmp.eq.f32.partialorder %v632, %v644
      %vm655 = vcmp.eq.f32.partialorder %v635, %v651
      %v656 = vsel %vm654, 1, 0
      %v657 = vsel %vm655, 1, 0
      %v658 = vcvt.s32.f32 %v656
      %v659 = vcvt.s32.f32 %v657
      %v661 = vperm.slane %v496, 0
      %v662 = vlaneseq
      %v663 = vshrl.u32 %v662, 7
      %665 = vset.pattern.permute.xlu0 %v663
      %666 = vperm.xlu0 %665, %v661
      %v667 = vpop.permute.xlu0 %666
      %v668 = vperm.slane %v496, 1
      %v669 = vlaneseq
      %v670 = vshrl.u32 %v669, 7
      %672 = vset.pattern.permute.xlu0 %v670
      %673 = vperm.xlu0 %672, %v668
      %v674 = vpop.permute.xlu0 %673
      %v677 = vmul.f32 %v658, %v667
      %v678 = vmul.f32 %v659, %v674
      %681 = vset.pattern.permute.xlu0 0
      %682 = vperm.xlu0 %681, %v677
      %v683 = vpop.permute.xlu0 %682
      %684 = vset.pattern.permute.xlu0 0
      %685 = vperm.xlu0 %684, %v678
      %v686 = vpop.permute.xlu0 %685
      %v687 = vperm.slane %v683, %v499
      %v688 = vperm.slane %v686, %v499
      %vm689 = vcmask 1041409
      %v690 = vsel %vm689, %v688, %v687
      %v692 = vsel %vm501, %v690, 0.0
      %693 = vadd.xlane.f32.xlu0 %v692
      %v694 = vpop.xlane.xlu0 %693
      %v695 = vrot.slane %v694, 4
      %v696 = vadd.f32 %v694, %v695
      %v697 = vrot.slane %v696, 2
      %v698 = vadd.f32 %v696, %v697
      %v699 = vrot.slane %v698, 1
      %v700 = vadd.f32 %v698, %v699
      %s701 = vtos %v700
      %s702 = smul.f32 %s701, 100.0
      %v703 = vstv %s512
      %v704 = vrcp.pop %v703
      %v705 = vmul.f32 %v703, %v704
      %v706 = vsub.f32 1.0, %v705
      %v707 = vmul.f32 %v704, %v706
      %v708 = vadd.f32 %v704, %v707
      %vm709 = vweird.f32 %v703
      %vm710 = vweird.f32 %v704
      %vm711 = vmor %vm709, %vm710
      %v712 = vsel %vm711, %v704, %v708
      %v713 = vand.u32 2147483647, %v703
      %vm714 = vcmp.eq.f32.partialorder %v713, 8.507059e+37
      %v715 = vand.u32 %v703, 2147483648
      %v716 = vor.u32 1.1754944e-38, %v715
      %v717 = vsel %vm714, %v716, %v712
      %s718 = vtos %v717
      %s719 = smul.f32 %s702, %s718
      %s720 = ssub.f32 100.0, %s719
      %v721 = vperm.slane %v495, 0
      %v722 = vlaneseq
      %v723 = vshrl.u32 %v722, 7
      %725 = vset.pattern.permute.xlu0 %v723
      %726 = vperm.xlu0 %725, %v721
      %v727 = vpop.permute.xlu0 %726
      %v728 = vperm.slane %v495, 1
      %v729 = vlaneseq
      %v730 = vshrl.u32 %v729, 7
      %732 = vset.pattern.permute.xlu0 %v730
      %733 = vperm.xlu0 %732, %v728
      %v734 = vpop.permute.xlu0 %733
      %vm735 = vcmp.eq.s32.totalorder %v499, %v727
      %vm736 = vcmp.eq.s32.totalorder %v499, %v734
      %v737 = vsel %vm735, 1, 0
      %v738 = vsel %vm736, 1, 0
      %v739 = vcvt.s32.f32 %v737
      %v740 = vcvt.s32.f32 %v738
      %v741 = vsel %vm533, %v492, -inf
      %742 = vmax.xlane.f32.xlu0 %v741
      %v743 = vpop.xlane.xlu0 %742
      %v744 = vsel %vm533, %v493, -inf
      %745 = vmax.xlane.f32.xlu0 %v744
      %v746 = vpop.xlane.xlu0 %745
      %v747 = vsub.f32 %v492, %v743
      %v748 = vsub.f32 %v493, %v746
      %v749 = vmul.f32 %v747, 1.442695
      %v750 = vpow.pop %v749
      %v751 = vmul.f32 %v748, 1.442695
      %v752 = vpow.pop %v751
      %v753 = vsel %vm533, %v750, 0.0
      %754 = vadd.xlane.f32.xlu0 %v753
      %v755 = vpop.xlane.xlu0 %754
      %v756 = vsel %vm533, %v752, 0.0
      %757 = vadd.xlane.f32.xlu0 %v756
      %v758 = vpop.xlane.xlu0 %757
      %v759 = vlog2.pop %v755
      %v760 = vmul.f32 %v759, 0.6931472
      %v761 = vlog2.pop %v758
      %v762 = vmul.f32 %v761, 0.6931472
      %v763 = vadd.f32 %v760, %v743
      %v764 = vadd.f32 %v762, %v746
      %v765 = vmul.f32 %v739, %v492
      %v766 = vmul.f32 %v740, %v493
      %v767 = vsel %vm533, %v765, 0.0
      %768 = vadd.xlane.f32.xlu0 %v767
      %v769 = vpop.xlane.xlu0 %768
      %v770 = vsel %vm533, %v766, 0.0
      %771 = vadd.xlane.f32.xlu0 %v770
      %v772 = vpop.xlane.xlu0 %771
      %v773 = vsub.f32 %v769, %v763
      %v774 = vsub.f32 %v772, %v764
      %v775 = vmul.f32 %v739, %v569
      %v776 = vmul.f32 %v740, %v569
      %v777 = vsel %vm533, %v775, 0.0
      %778 = vadd.xlane.f32.xlu0 %v777
      %v779 = vpop.xlane.xlu0 %778
      %v780 = vsel %vm533, %v776, 0.0
      %781 = vadd.xlane.f32.xlu0 %v780
      %v782 = vpop.xlane.xlu0 %781
      %v783 = vsub.f32 0.0, %v773
      %v784 = vsub.f32 0.0, %v774
      %v785 = vmul.f32 %v779, %v783
      %v786 = vmul.f32 %v782, %v784
      %v787 = vsel %vm583, %v785, 0.0
      %v788 = vsel %vm583, %v786, 0.0
      %v789 = vadd.f32 %v787, %v788
      %790 = vadd.xlane.f32.xlu0 %v789
      %v791 = vpop.xlane.xlu0 %790
      %v792 = vrot.slane %v791, 4
      %v793 = vadd.f32 %v791, %v792
      %v794 = vrot.slane %v793, 2
      %v795 = vadd.f32 %v793, %v794
      %v796 = vrot.slane %v795, 1
      %v797 = vadd.f32 %v795, %v796
      %s798 = vtos %v797
      %v799 = vsel %vm583, %v779, 0.0
      %v800 = vsel %vm583, %v782, 0.0
      %v801 = vadd.f32 %v799, %v800
      %802 = vadd.xlane.f32.xlu0 %v801
      %v803 = vpop.xlane.xlu0 %802
      %v804 = vrot.slane %v803, 4
      %v805 = vadd.f32 %v803, %v804
      %v806 = vrot.slane %v805, 2
      %v807 = vadd.f32 %v805, %v806
      %v808 = vrot.slane %v807, 1
      %v809 = vadd.f32 %v807, %v808
      %s810 = vtos %v809
      %s811 = smax.f32 %s810, 1e-12
      %v812 = vstv %s811
      %v813 = vrcp.pop %v812
      %v814 = vmul.f32 %v812, %v813
      %v815 = vsub.f32 1.0, %v814
      %v816 = vmul.f32 %v813, %v815
      %v817 = vadd.f32 %v813, %v816
      %vm818 = vweird.f32 %v812
      %vm819 = vweird.f32 %v813
      %vm820 = vmor %vm818, %vm819
      %v821 = vsel %vm820, %v813, %v817
      %v822 = vand.u32 2147483647, %v812
      %vm823 = vcmp.eq.f32.partialorder %v822, 8.507059e+37
      %v824 = vand.u32 %v812, 2147483648
      %v825 = vor.u32 1.1754944e-38, %v824
      %v826 = vsel %vm823, %v825, %v821
      %s827 = vtos %v826
      %s828 = smul.f32 %s798, %s827
      %vm829 = vcmp.ge.f32.partialorder %v492, %v743
      %vm830 = vcmp.ge.f32.partialorder %v493, %v746
      %v831 = vsel %vm829, %v500, 16.0
      %v832 = vsel %vm830, %v500, 16.0
      %v833 = vsel %vm533, %v831, inf
      %834 = vmin.xlane.f32.xlu0 %v833
      %v835 = vpop.xlane.xlu0 %834
      %v836 = vsel %vm533, %v832, inf
      %837 = vmin.xlane.f32.xlu0 %v836
      %v838 = vpop.xlane.xlu0 %837
      %v839 = vcvt.s32.f32 %v495
      %v841 = vperm.slane %v839, 0
      %v842 = vlaneseq
      %v843 = vshrl.u32 %v842, 7
      %845 = vset.pattern.permute.xlu0 %v843
      %846 = vperm.xlu0 %845, %v841
      %v847 = vpop.permute.xlu0 %846
      %v848 = vperm.slane %v839, 1
      %v849 = vlaneseq
      %v850 = vshrl.u32 %v849, 7
      %852 = vset.pattern.permute.xlu0 %v850
      %853 = vperm.xlu0 %852, %v848
      %v854 = vpop.permute.xlu0 %853
      %vm857 = vcmp.eq.f32.partialorder %v835, %v847
      %vm858 = vcmp.eq.f32.partialorder %v838, %v854
      %v859 = vsel %vm857, 1, 0
      %v860 = vsel %vm858, 1, 0
      %v861 = vcvt.s32.f32 %v859
      %v862 = vcvt.s32.f32 %v860
      %v863 = vmul.f32 %v861, %v667
      %v864 = vmul.f32 %v862, %v674
      %867 = vset.pattern.permute.xlu0 0
      %868 = vperm.xlu0 %867, %v863
      %v869 = vpop.permute.xlu0 %868
      %870 = vset.pattern.permute.xlu0 0
      %871 = vperm.xlu0 %870, %v864
      %v872 = vpop.permute.xlu0 %871
      %v873 = vperm.slane %v869, %v499
      %v874 = vperm.slane %v872, %v499
      %v875 = vsel %vm689, %v874, %v873
      %v877 = vsel %vm501, %v875, 0.0
      %878 = vadd.xlane.f32.xlu0 %v877
      %v879 = vpop.xlane.xlu0 %878
      %v880 = vrot.slane %v879, 4
      %v881 = vadd.f32 %v879, %v880
      %v882 = vrot.slane %v881, 2
      %v883 = vadd.f32 %v881, %v882
      %v884 = vrot.slane %v883, 1
      %v885 = vadd.f32 %v883, %v884
      %s886 = vtos %v885
      %s887 = smul.f32 %s886, 100.0
      %v888 = vstv %s512
      %v889 = vrcp.pop %v888
      %v890 = vmul.f32 %v888, %v889
      %v891 = vsub.f32 1.0, %v890
      %v892 = vmul.f32 %v889, %v891
      %v893 = vadd.f32 %v889, %v892
      %vm894 = vweird.f32 %v888
      %vm895 = vweird.f32 %v889
      %vm896 = vmor %vm894, %vm895
      %v897 = vsel %vm896, %v889, %v893
      %v898 = vand.u32 2147483647, %v888
      %vm899 = vcmp.eq.f32.partialorder %v898, 8.507059e+37
      %v900 = vand.u32 %v888, 2147483648
      %v901 = vor.u32 1.1754944e-38, %v900
      %v902 = vsel %vm899, %v901, %v897
      %s903 = vtos %v902
      %s904 = smul.f32 %s887, %s903
      %s905 = ssub.f32 100.0, %s904
      %vm906 = vcmp.eq.s32.totalorder %v499, 15
      %v907 = vsel %vm906, %v490, 0.0
      %v908 = vsel %vm906, %v491, 0.0
      %v909 = vsel %vm533, %v907, 0.0
      %910 = vadd.xlane.f32.xlu0 %v909
      %v911 = vpop.xlane.xlu0 %910
      %v912 = vsel %vm533, %v908, 0.0
      %913 = vadd.xlane.f32.xlu0 %v912
      %v914 = vpop.xlane.xlu0 %913
      %v915 = vsel %vm906, -inf, %v490
      %v916 = vsel %vm906, -inf, %v491
      %v917 = vsel %vm533, %v915, -inf
      %918 = vmax.xlane.f32.xlu0 %v917
      %v919 = vpop.xlane.xlu0 %918
      %v920 = vsel %vm533, %v916, -inf
      %921 = vmax.xlane.f32.xlu0 %v920
      %v922 = vpop.xlane.xlu0 %921
      %vm923 = vcmp.ge.f32.partialorder %v919, %v911
      %vm924 = vcmp.ge.f32.partialorder %v922, %v914
      %v925 = vsel %vm923, 1, 0
      %v926 = vsel %vm924, 1, 0
      %v927 = vcvt.s32.f32 %v925
      %v928 = vcvt.s32.f32 %v926
      %v931 = vperm.slane %v927, %v499
      %v932 = vperm.slane %v928, %v499
      %v933 = vsel %vm689, %v932, %v931
      %v935 = vsel %vm501, %v933, 0.0
      %936 = vadd.xlane.f32.xlu0 %v935
      %v937 = vpop.xlane.xlu0 %936
      %v938 = vld [vmem:[%s6] sm:$0x3]
      %v939 = vsub.f32 %v937, %v938
      %v940 = vand.u32 2147483647, %v939
      %vm941 = vcmask 1024
      %v942 = vsel %vm941, %v940, 0.0
      %943 = vadd.xlane.f32.xlu0 %v942
      %v944 = vpop.xlane.xlu0 %943
      %v945 = vrot.slane %v944, 4
      %v946 = vadd.f32 %v944, %v945
      %v947 = vrot.slane %v946, 2
      %v948 = vadd.f32 %v946, %v947
      %v949 = vrot.slane %v948, 1
      %v950 = vadd.f32 %v948, %v949
      %s951 = vtos %v950
      %v952 = vrcp.pop 2.0
      %v953 = vmul.f32 2.0, %v952
      %v954 = vsub.f32 1.0, %v953
      %v955 = vmul.f32 %v952, %v954
      %v956 = vadd.f32 %v952, %v955
      %vm957 = vweird.f32 %v952
      %v958 = vsel %vm957, %v952, %v956
      %s959 = vtos %v958
      %s960 = smul.f32 %s951, %s959
      %v961 = vld [vmem:[%s481] sm:$0xf]
      %v962 = vld [vmem:[%s8] sm:$0xf]
      %v963 = vsub.f32 %v961, %v962
      %v964 = vand.u32 2147483647, %v963
      %vm965 = vcmask 44032
      %v966 = vsel %vm965, %v964, 0.0
      %967 = vadd.xlane.f32.xlu0 %v966
      %v968 = vpop.xlane.xlu0 %967
      %v969 = vrot.slane %v968, 4
      %v970 = vadd.f32 %v968, %v969
      %v971 = vrot.slane %v970, 2
      %v972 = vadd.f32 %v970, %v971
      %v973 = vrot.slane %v972, 1
      %v974 = vadd.f32 %v972, %v973
      %s975 = vtos %v974
      %v976 = vmul.f32 %v961, 0.5
      %v978 = vrot.slane %v976, 2
      %v980 = vsub.f32 %v961, %v978
      %v981 = vadd.f32 %v961, %v978
      %v982 = vmul.f32 %v962, 0.5
      %v984 = vrot.slane %v982, 2
      %v986 = vsub.f32 %v962, %v984
      %v987 = vadd.f32 %v962, %v984
      %v988 = vmin.f32 %v981, %v987
      %v989 = vmax.f32 %v980, %v986
      %v990 = vsub.f32 %v988, %v989
      %v991 = vmax.f32 %v990, 0.0
      %v993 = vrot.slane %v991, 1
      %v995 = vmul.f32 %v991, %v993
      %v996 = vsub.f32 %v981, %v980
      %v998 = vrot.slane %v996, 1
      %v1000 = vmul.f32 %v996, %v998
      %v1001 = vsub.f32 %v987, %v986
      %v1003 = vrot.slane %v1001, 1
      %v1005 = vmul.f32 %v1001, %v1003
      %v1006 = vadd.f32 %v1000, %v1005
      %v1007 = vsub.f32 %v1006, %v995
      %v1008 = vmax.f32 %v981, %v987
      %v1009 = vmin.f32 %v980, %v986
      %v1010 = vsub.f32 %v1008, %v1009
      %v1012 = vrot.slane %v1010, 1
      %v1014 = vmul.f32 %v1010, %v1012
      %vm1015 = vcmp.gt.f32.partialorder %v1007, 0.0
      %v1016 = vsel %vm1015, %v1007, 1.0
      %vm1017 = vcmp.gt.f32.partialorder %v1014, 0.0
      %v1018 = vsel %vm1017, %v1014, 1.0
      %v1019 = vrcp.pop %v1016
      %v1020 = vmul.f32 %v1016, %v1019
      %v1021 = vsub.f32 1.0, %v1020
      %v1022 = vmul.f32 %v1019, %v1021
      %v1023 = vadd.f32 %v1019, %v1022
      %vm1024 = vweird.f32 %v1016
      %vm1025 = vweird.f32 %v1019
      %vm1026 = vmor %vm1024, %vm1025
      %v1027 = vsel %vm1026, %v1019, %v1023
      %v1028 = vand.u32 2147483647, %v1016
      %vm1029 = vcmp.eq.f32.partialorder %v1028, 8.507059e+37
      %v1030 = vand.u32 %v1016, 2147483648
      %v1031 = vor.u32 1.1754944e-38, %v1030
      %v1032 = vsel %vm1029, %v1031, %v1027
      %v1033 = vmul.f32 %v995, %v1032
      %v1034 = vsub.f32 %v1014, %v1007
      %v1035 = vrcp.pop %v1018
      %v1036 = vmul.f32 %v1018, %v1035
      %v1037 = vsub.f32 1.0, %v1036
      %v1038 = vmul.f32 %v1035, %v1037
      %v1039 = vadd.f32 %v1035, %v1038
      %vm1040 = vweird.f32 %v1018
      %vm1041 = vweird.f32 %v1035
      %vm1042 = vmor %vm1040, %vm1041
      %v1043 = vsel %vm1042, %v1035, %v1039
      %v1044 = vand.u32 2147483647, %v1018
      %vm1045 = vcmp.eq.f32.partialorder %v1044, 8.507059e+37
      %v1046 = vand.u32 %v1018, 2147483648
      %v1047 = vor.u32 1.1754944e-38, %v1046
      %v1048 = vsel %vm1045, %v1047, %v1043
      %v1049 = vmul.f32 %v1034, %v1048
      %v1050 = vsub.f32 %v1033, %v1049
      %v1051 = vsub.f32 1.0, %v1050
      %vm1052 = vcmask 40960
      %v1053 = vsel %vm1052, %v1051, 0.0
      %1054 = vadd.xlane.f32.xlu0 %v1053
      %v1055 = vpop.xlane.xlu0 %1054
      %s1056 = vtos %v1055
      %v1057 = vld [vmem:[%s485] sm:$0x7]
      %v1058 = vld [vmem:[%s10] sm:$0x7]
      %v1059 = vsub.f32 %v1057, %v1058
      %v1060 = vmul.f32 %v1059, %v1059
      %vm1061 = vcmask 1042432
      %v1062 = vsel %vm1061, %v1060, 0.0
      %1063 = vadd.xlane.f32.xlu0 %v1062
      %v1064 = vpop.xlane.xlu0 %1063
      %v1065 = vrot.slane %v1064, 4
      %v1066 = vadd.f32 %v1064, %v1065
      %v1067 = vrot.slane %v1066, 2
      %v1068 = vadd.f32 %v1066, %v1067
      %v1069 = vrot.slane %v1068, 1
      %v1070 = vadd.f32 %v1068, %v1069
      %s1071 = vtos %v1070
      %v1072 = vlaneseq
      %v1073 = vshrl.u32 %v1072, 7
      %vm1074 = vcmp.eq.s32.totalorder %v1073, 0
      %vm1075 = vcmp.eq.s32.totalorder %v499, 0
      %vm1076 = vmand %vm1074, %vm1075
      %v1077 = vstv %s625
      %v1078 = vsel %vm1076, %v1077, 0.0
      %vm1079 = vcmp.eq.s32.totalorder %v499, 1
      %vm1080 = vmand %vm1074, %vm1079
      %v1081 = vstv %s720
      %v1082 = vsel %vm1080, %v1081, %v1078
      %vm1083 = vcmp.eq.s32.totalorder %v499, 2
      %vm1084 = vmand %vm1074, %vm1083
      %v1085 = vstv %s960
      %v1086 = vsel %vm1084, %v1085, %v1082
      %vm1087 = vcmp.eq.s32.totalorder %v499, 3
      %vm1088 = vmand %vm1074, %vm1087
      %v1089 = vstv %s975
      %v1090 = vsel %vm1088, %v1089, %v1086
      %vm1091 = vcmp.eq.s32.totalorder %v499, 4
      %vm1092 = vmand %vm1074, %vm1091
      %v1093 = vstv %s1056
      %v1094 = vsel %vm1092, %v1093, %v1090
      %vm1095 = vcmp.eq.s32.totalorder %v499, 5
      %vm1096 = vmand %vm1074, %vm1095
      %v1097 = vstv %s828
      %v1098 = vsel %vm1096, %v1097, %v1094
      %vm1099 = vcmp.eq.s32.totalorder %v499, 6
      %vm1100 = vmand %vm1074, %vm1099
      %v1101 = vstv %s905
      %v1102 = vsel %vm1100, %v1101, %v1098
      %vm1103 = vcmp.eq.s32.totalorder %v499, 7
      %vm1104 = vmand %vm1074, %vm1103
      %v1105 = vstv %s1071
      %v1106 = vsel %vm1104, %v1105, %v1102
      %1107 = vst [vmem:[%s489] sm:$0xff] %v1106
      %p1108 = scmp.lt.s32.totalorder %s22, 1
      %s1109 = scalar_select %p1108, %s22, 1
      %s1110 = smul.addr %s1109, 8
      %s1111 = scalar_lea.vmem %s11, %s1110
      // Predicated region
      $region65: #{_criterion_core.1} parent=63 // pred_check
        %p1112 = pneg %p306
      $region66: #{_criterion_core.1} parent=63 // pred_check_branch
        %1114 = sbr.rel (%p1112) target = $region68
      $region67: #{_criterion_core.1} parent=63 // pred_region
        _
      $region68: #{_criterion_core.1} parent=63 // pred_fallthru
        _
    $region64: #{_criterion_core.1} parent=5 // pred_fallthru
      _
    %p1115 = scmp.le.s32.totalorder 2, %s17
    // Predicated region
    $region69: #{_criterion_core.1} parent=5 // pred_check
      %p1116 = pneg %p1115
    $region70: #{_criterion_core.1} parent=5 // pred_check_branch
      %1118 = sbr.rel (%p1116) target = $region72
    $region71: #{_criterion_core.1} parent=5 // pred_region
      %s1119 = ssub.s32 %s17, 2
      // Predicated region
      $region73: #{_criterion_core.1} parent=71 // pred_check
        %p1120 = pneg %p312
      $region74: #{_criterion_core.1} parent=71 // pred_check_branch
        %1122 = sbr.rel (%p1120) target = $region76
      $region75: #{_criterion_core.1} parent=71 // pred_region
        %p1123 = scmp.lt.s32.totalorder %s23, 1
        %s1124 = scalar_select %p1123, %s23, 1
        %s1125 = smul.addr %s1124, 8
        %s1126 = scalar_lea.vmem %s11, %s1125
      $region76: #{_criterion_core.1} parent=71 // pred_fallthru
        _
    $region72: #{_criterion_core.1} parent=5 // pred_fallthru
      _
  $region6: #{_criterion_core.1} parent=0 // loop_footer
    %s21 = sadd.s32 1, %s17
  $region7: #{_criterion_core.1} parent=0 // loop_footer_branch
    %16 = sbr.rel target = $region3
  $region8: #{_criterion_core.1} parent=0 // loop_exit
    _

</llo_original>
